<compile_context>
chip_gen: v5e
topology: v5e:2x2
jax: 0.10.0
libtpu: 0.0.40
codegen_flags: <defaults>
</compile_context>

<pallas_src>
import jax
import jax.numpy as jnp
import numpy as np
from jax import lax
from jax.experimental import pallas as pl
from jax.experimental.pallas import tpu as pltpu


# ----------------------- fused fgwb + fgwd kernel ----------------------------
def _fgwf_fused_kernel(w_ref, atoms_ref, embs_ref, trans_t_ref,
                       prob_ref, prob_row_ref, graph_ref, emb_ref, tran_ref,
                       gb_ref, eb_ref, d_ref):
    s = pl.program_id(0)                     # sample index on the parallel grid
    K = atoms_ref.shape[0]
    nb = gb_ref.shape[-1]
    demb = eb_ref.shape[-1]
    f32 = jnp.float32
    bf16 = jnp.bfloat16
    abt = (((1,), (1,)), ((), ()))           # A @ B^T (contract last dims)

    # ---------------- fgwb: barycenter graph / embedding ---------------------
    #   gb = sum_k w_k * tr_k^T @ sigmoid(atom_k) @ tr_k   / (pb pb^T)
    #   eb = sum_k w_k * tr_k^T @ E_k                      / pb
    # K is small & static: unrolled rank-2 bf16 MXU matmuls over leading-axis
    # slices (no reshapes / relayouts of the stacked K axis).
    gb_raw = jnp.zeros((nb, nb), f32)
    eb_raw = jnp.zeros((nb, demb), f32)
    for k in range(K):
        w_k = w_ref[s, k]                                            # SMEM scalar
        g_k = jax.nn.sigmoid(atoms_ref[k]).astype(bf16)              # (ns, ns)
        trt_k = trans_t_ref[0, k].astype(bf16)                       # (nb, ns) = tr_k^T
        e_k = embs_ref[k].astype(bf16)                               # (ns, d)
        a_k = jnp.dot(trt_k, g_k, preferred_element_type=f32)        # tr_k^T @ G_k
        gb_k = lax.dot_general(a_k.astype(bf16), trt_k, abt,
                               preferred_element_type=f32)           # ... @ tr_k
        eb_k = jnp.dot(trt_k, e_k, preferred_element_type=f32)       # tr_k^T @ E_k
        gb_raw = gb_raw + w_k * gb_k
        eb_raw = eb_raw + w_k * eb_k

    # exact reciprocals (tiny vectors; keeps returned gb/eb accurate)
    inv_p = pl.reciprocal(prob_ref[0], approx=False)                 # (nb, 1)
    inv_p_row = pl.reciprocal(prob_row_ref[0], approx=False)         # (1, nb)
    gb = gb_raw * inv_p * inv_p_row                                  # / (pb pb^T)
    eb = eb_raw * inv_p                                              # / pb
    gb_ref[0] = gb
    eb_ref[0] = eb

    # ---------------- fgwd: fused GW distance to (graph, emb) ----------------
    graph = graph_ref[0]                     # (n, n)
    tran = tran_ref[0]                       # (n, nb)
    emb = emb_ref[0]                         # (n, d)
    prob = prob_ref[0]                       # (n, 1)
    prob_row = prob_row_ref[0]               # (1, n)

    f1 = jnp.dot(graph * graph, prob, preferred_element_type=f32)              # (n, 1)
    # f2[0, i] = sum_j pb[j] * gb[i, j]^2  (A @ B^T form, no transpose)
    f2 = lax.dot_general(prob_row, gb * gb, abt, preferred_element_type=f32)   # (1, nb)
    m = jnp.dot(graph.astype(bf16), tran.astype(bf16),
                preferred_element_type=f32)                                    # (n, nb)
    cross = lax.dot_general(m.astype(bf16), gb.astype(bf16), abt,
                            preferred_element_type=f32)                        # m @ gb^T
    cost = f1 + f2 - 2.0 * cross

    # fused embedding term 0.5 * (1 - cosine): eps-guarded rsqrt row norms,
    # then one A @ B^T matmul.
    inv_ns = lax.rsqrt(jnp.sum(emb * emb, axis=1, keepdims=True) + 1e-12)      # (n, 1)
    inv_nt = lax.rsqrt(jnp.sum(eb * eb, axis=1, keepdims=True) + 1e-12)        # (nb, 1)
    cosine = lax.dot_general((emb * inv_ns).astype(bf16),
                             (eb * inv_nt).astype(bf16), abt,
                             preferred_element_type=f32)                       # (n, nb)
    cost = cost + 0.5 * (1.0 - cosine)

    # scalar distance for this sample (single small store per grid step)
    d_ref[0] = jnp.sum(cost * tran, keepdims=True)


def fgwf_fused_pallas(weights, atoms, atom_embs, trans_t, prob, prob_row,
                      graph, embedding, tran):
    """One pallas_call computing (graph_b, emb_b, d_fgw) for S samples."""
    S, K = weights.shape
    ns = atoms.shape[-1]
    nb = prob.shape[-2]
    demb = atom_embs.shape[-1]
    n = graph.shape[-1]
    assert n == nb, "kernel (like the reference) assumes n == nb"
    assert trans_t.shape == (S, K, nb, ns)

    resident = lambda s: (0, 0, 0)           # shared atom tensors stay in VMEM

    gb, eb, dv = pl.pallas_call(
        _fgwf_fused_kernel,
        grid=(S,),
        in_specs=[
            pl.BlockSpec(memory_space=pltpu.MemorySpace.SMEM),       # weights (S, K)
            pl.BlockSpec((K, ns, ns), resident),                      # atoms
            pl.BlockSpec((K, ns, demb), resident),                    # atom_embs
            pl.BlockSpec((1, K, nb, ns), lambda s: (s, 0, 0, 0)),     # trans^T (per sample)
            pl.BlockSpec((1, n, 1), lambda s: (s, 0, 0)),             # prob column
            pl.BlockSpec((1, 1, n), lambda s: (s, 0, 0)),             # prob row
            pl.BlockSpec((1, n, n), lambda s: (s, 0, 0)),             # graph
            pl.BlockSpec((1, n, demb), lambda s: (s, 0, 0)),          # embedding
            pl.BlockSpec((1, n, nb), lambda s: (s, 0, 0)),            # tran
        ],
        out_specs=(
            pl.BlockSpec((1, nb, nb), lambda s: (s, 0, 0)),
            pl.BlockSpec((1, nb, demb), lambda s: (s, 0, 0)),
            pl.BlockSpec((1, 1, 1), lambda s: (s, 0, 0)),
        ),
        out_shape=(
            jax.ShapeDtypeStruct((S, nb, nb), jnp.float32),
            jax.ShapeDtypeStruct((S, nb, demb), jnp.float32),
            jax.ShapeDtypeStruct((S, 1, 1), jnp.float32),
        ),
        compiler_params=pltpu.CompilerParams(
            dimension_semantics=("parallel",)),    # both TCs on v7x
    )(weights, atoms, atom_embs, trans_t, prob, prob_row, graph, embedding, tran)
    return gb, eb, dv


# ------------------------------ glue / params --------------------------------
def init_fgwf_params(key, num_atoms, num_samples, size_atom, dim_embedding):
    k1, k2, k3 = jax.random.split(key, 3)
    weights = jax.random.normal(k1, (num_atoms, num_samples), jnp.float32)
    atoms = jax.random.normal(k2, (num_atoms, size_atom, size_atom), jnp.float32)
    atom_embs = (jax.random.normal(k3, (num_atoms, size_atom, dim_embedding),
                                   jnp.float32) / dim_embedding)
    ps = jnp.ones((num_atoms, size_atom, 1), jnp.float32) / size_atom
    return dict(weights=weights, atoms=atoms, atom_embs=atom_embs, ps=ps)


def _fgwf_forward_batch_impl(params, graphs, probs, embeddings, indices,
                             trans, trans0):
    """Batched FGWF forward: S samples through one pallas_call."""
    w_cols = jnp.transpose(params["weights"][:, indices])       # (S, K) raw columns
    weights = jax.nn.softmax(w_cols, axis=-1)                   # softmax over atoms
    trans_t = jnp.swapaxes(trans, -1, -2)                       # (S, K, nb, ns)
    prob_row = jnp.swapaxes(probs, -1, -2)                      # (S, 1, n)
    gb, eb, dv = fgwf_fused_pallas(weights, params["atoms"], params["atom_embs"],
                                   trans_t, probs, prob_row,
                                   graphs, embeddings, trans0)
    return dv[:, 0, 0], w_cols, gb, eb


fgwf_forward_batch = jax.jit(_fgwf_forward_batch_impl)


@jax.jit
def fgwf_forward(params, graph, prob, embedding, index, trans, tran):
    """Pallas-backed equivalent of FGWF.forward (single sample)."""
    idx = jnp.asarray(index, dtype=jnp.int32).reshape((1,))
    d, w, gb, eb = _fgwf_forward_batch_impl(
        params, graph[None], prob[None], embedding[None], idx,
        trans[None], tran[None])
    return d[0], w[0], gb[0], eb[0]


# --------------------------- pure-JAX reference ------------------------------
def fgwf_forward_ref(params, graph, prob, embedding, index, trans, tran):
    w_col = params["weights"][:, index]
    weights = jax.nn.softmax(w_col, axis=0)
    nb = prob.shape[0]
    d = params["atom_embs"].shape[-1]
    gb = jnp.zeros((nb, nb), jnp.float32)
    eb = jnp.zeros((nb, d), jnp.float32)
    for k in range(params["atoms"].shape[0]):
        gk = jax.nn.sigmoid(params["atoms"][k])
        gb = gb + weights[k] * (trans[k].T @ gk @ trans[k])
        eb = eb + weights[k] * (trans[k].T @ params["atom_embs"][k])
    gb = gb / (prob @ prob.T)
    eb = eb / (prob @ jnp.ones((1, d), jnp.float32))
    f1 = (graph ** 2) @ prob
    f2 = ((gb ** 2) @ prob).T
    cost = f1 + f2 - 2.0 * (graph @ tran @ gb.T)
    tmp1 = embedding @ eb.T
    tmp2 = (jnp.sqrt((embedding ** 2).sum(1, keepdims=True))
            @ jnp.sqrt((eb ** 2).sum(1, keepdims=True)).T)
    cost = cost + 0.5 * (1.0 - tmp1 / tmp2)
    return (cost * tran).sum(), w_col, gb, eb


# ----------------------------------- main ------------------------------------
if __name__ == "__main__":
    K = 4      # num_atoms
    NS = 16    # size of every atom (uniform)
    N = 16     # nodes per input graph (= barycenter size nb)
    D = 4      # dim_embedding
    S = 8      # num_samples, batched through the kernel's parallel grid axis

    params = init_fgwf_params(jax.random.PRNGKey(0), K, S, NS, D)

    kg, ke = jax.random.split(jax.random.PRNGKey(1))
    graphs = jax.random.uniform(kg, (S, N, N), jnp.float32)
    graphs = 0.5 * (graphs + jnp.swapaxes(graphs, -1, -2))      # symmetric adjacency
    probs = jnp.ones((S, N, 1), jnp.float32) / N                # node distributions
    embeddings = jax.random.normal(ke, (S, N, D), jnp.float32)  # node features
    indices = jnp.arange(S, dtype=jnp.int32)

    # standard OT initialization: outer products of the marginals
    trans = params["ps"][None] * jnp.swapaxes(probs, -1, -2)[:, None]   # (S, K, NS, N)
    tran0 = jnp.matmul(probs, jnp.swapaxes(probs, -1, -2))              # (S, N, N)

    d_b, w_b, gb_b, eb_b = fgwf_forward_batch(
        params, graphs, probs, embeddings, indices, trans, tran0)
    jax.block_until_ready((d_b, w_b, gb_b, eb_b))

    ref_fn = jax.jit(fgwf_forward_ref)
    for s in range(S):
        d_r, w_r, gb_r, eb_r = ref_fn(params, graphs[s], probs[s], embeddings[s],
                                      s, trans[s], tran0[s])
        # MXU operands are bf16 (f32 accumulation) -> slightly relaxed tolerances
        np.testing.assert_allclose(np.asarray(d_b[s]), np.asarray(d_r),
                                   rtol=5e-3, atol=5e-3)
        np.testing.assert_allclose(np.asarray(gb_b[s]), np.asarray(gb_r),
                                   rtol=5e-3, atol=5e-3)
        np.testing.assert_allclose(np.asarray(eb_b[s]), np.asarray(eb_r),
                                   rtol=5e-3, atol=5e-3)
        np.testing.assert_allclose(np.asarray(w_b[s]), np.asarray(w_r),
                                   rtol=1e-6, atol=1e-6)

    # module-equivalent single-sample forward (same fused kernel, S == 1 grid)
    d0, w0, gb0, eb0 = fgwf_forward(params, graphs[0], probs[0], embeddings[0],
                                    0, trans[0], tran0[0])
    jax.block_until_ready((d0, w0, gb0, eb0))
    np.testing.assert_allclose(np.asarray(d0), np.asarray(d_b[0]),
                               rtol=1e-5, atol=1e-5)

    print("KERNEL_OK")
</pallas_src>

<mosaic_0001>
module attributes {stable_mosaic.version = 11 : i64} {
  func.func @_fgwf_fused_kernel(%arg0: i32, %arg1: memref<8x4xf32, #tpu.memory_space<smem>>, %arg2: memref<4x16x16xf32, #tpu.memory_space<vmem>>, %arg3: memref<4x16x4xf32, #tpu.memory_space<vmem>>, %arg4: memref<1x4x16x16xf32, #tpu.memory_space<vmem>>, %arg5: memref<1x16x1xf32, #tpu.memory_space<vmem>>, %arg6: memref<1x1x16xf32, #tpu.memory_space<vmem>>, %arg7: memref<1x16x16xf32, #tpu.memory_space<vmem>>, %arg8: memref<1x16x4xf32, #tpu.memory_space<vmem>>, %arg9: memref<1x16x16xf32, #tpu.memory_space<vmem>>, %arg10: memref<1x16x16xf32, #tpu.memory_space<vmem>>, %arg11: memref<1x16x4xf32, #tpu.memory_space<vmem>>, %arg12: memref<1x1x1xf32, #tpu.memory_space<vmem>>) attributes {dimension_semantics = [#tpu.dimension_semantics<parallel>], iteration_bounds = array<i64: 8>, scalar_prefetch = 0 : i64, scratch_operands = 0 : i64, tpu.core_type = #tpu.core_type<tc>, window_params = [{transform_indices = @transform_0, window_bounds = array<i64: 8, 4>}, {pipeline_mode = #tpu.pipeline_mode<synchronous>, transform_indices = @transform_1, window_bounds = array<i64: 4, 16, 16>}, {pipeline_mode = #tpu.pipeline_mode<synchronous>, transform_indices = @transform_2, window_bounds = array<i64: 4, 16, 4>}, {transform_indices = @transform_3, window_bounds = array<i64: 1, 4, 16, 16>}, {transform_indices = @transform_4, window_bounds = array<i64: 1, 16, 1>}, {transform_indices = @transform_5, window_bounds = array<i64: 1, 1, 16>}, {transform_indices = @transform_6, window_bounds = array<i64: 1, 16, 16>}, {transform_indices = @transform_7, window_bounds = array<i64: 1, 16, 4>}, {transform_indices = @transform_8, window_bounds = array<i64: 1, 16, 16>}, {transform_indices = @transform_9, window_bounds = array<i64: 1, 16, 16>}, {transform_indices = @transform_10, window_bounds = array<i64: 1, 16, 4>}, {transform_indices = @transform_11, window_bounds = array<i64: 1, 1, 1>}]} {
    %cst = arith.constant 0.000000e+00 : f32
    %0 = vector.broadcast %cst : f32 to vector<16x16xf32>
    %cst_0 = arith.constant 0.000000e+00 : f32
    %1 = vector.broadcast %cst_0 : f32 to vector<16x4xf32>
    %2 = arith.index_cast %arg0 : i32 to index
    %c0 = arith.constant 0 : index
    %3 = memref.load %arg1[%2, %c0] : memref<8x4xf32, #tpu.memory_space<smem>>
    %c0_1 = arith.constant 0 : index
    %c0_2 = arith.constant 0 : index
    %c0_3 = arith.constant 0 : index
    %4 = vector.load %arg2[%c0_1, %c0_2, %c0_3] : memref<4x16x16xf32, #tpu.memory_space<vmem>>, vector<1x16x16xf32>
    %5 = vector.shape_cast %4 : vector<1x16x16xf32> to vector<16x16xf32>
    %6 = arith.negf %5 : vector<16x16xf32>
    %7 = math.exp %6 : vector<16x16xf32>
    %cst_4 = arith.constant 1.000000e+00 : f32
    %8 = vector.broadcast %cst_4 : f32 to vector<16x16xf32>
    %9 = arith.addf %8, %7 : vector<16x16xf32>
    %10 = arith.divf %8, %9 : vector<16x16xf32>
    %11 = arith.truncf %10 : vector<16x16xf32> to vector<16x16xbf16>
    %c0_5 = arith.constant 0 : index
    %c0_6 = arith.constant 0 : index
    %c0_7 = arith.constant 0 : index
    %c0_8 = arith.constant 0 : index
    %12 = vector.load %arg4[%c0_5, %c0_6, %c0_7, %c0_8] : memref<1x4x16x16xf32, #tpu.memory_space<vmem>>, vector<1x1x16x16xf32>
    %13 = vector.shape_cast %12 : vector<1x1x16x16xf32> to vector<16x16xf32>
    %14 = arith.truncf %13 : vector<16x16xf32> to vector<16x16xbf16>
    %c0_9 = arith.constant 0 : index
    %c0_10 = arith.constant 0 : index
    %c0_11 = arith.constant 0 : index
    %15 = vector.load %arg3[%c0_9, %c0_10, %c0_11] : memref<4x16x4xf32, #tpu.memory_space<vmem>>, vector<1x16x4xf32>
    %16 = vector.shape_cast %15 : vector<1x16x4xf32> to vector<16x4xf32>
    %17 = arith.truncf %16 : vector<16x4xf32> to vector<16x4xbf16>
    %cst_12 = arith.constant dense<0.000000e+00> : vector<16x16xf32>
    %18 = tpu.matmul %14, %11, %cst_12 {dimension_numbers = #tpu.dot_dimension_numbers<[1], [0], [0], [1], [0, 0, 1, 1], [], []>} : vector<16x16xbf16>, vector<16x16xbf16>, vector<16x16xf32> -> vector<16x16xf32>
    %19 = arith.truncf %18 : vector<16x16xf32> to vector<16x16xbf16>
    %cst_13 = arith.constant dense<0.000000e+00> : vector<16x16xf32>
    %20 = tpu.matmul %19, %14, %cst_13 {dimension_numbers = #tpu.dot_dimension_numbers<[1], [1], [0], [0], [0, 0, 1, 0], [], []>} : vector<16x16xbf16>, vector<16x16xbf16>, vector<16x16xf32> -> vector<16x16xf32>
    %cst_14 = arith.constant dense<0.000000e+00> : vector<16x4xf32>
    %21 = tpu.matmul %14, %17, %cst_14 {dimension_numbers = #tpu.dot_dimension_numbers<[1], [0], [0], [1], [0, 0, 1, 1], [], []>} : vector<16x16xbf16>, vector<16x4xbf16>, vector<16x4xf32> -> vector<16x4xf32>
    %22 = vector.broadcast %3 : f32 to vector<16x16xf32>
    %23 = arith.mulf %22, %20 : vector<16x16xf32>
    %24 = arith.addf %0, %23 : vector<16x16xf32>
    %25 = vector.broadcast %3 : f32 to vector<16x4xf32>
    %26 = arith.mulf %25, %21 : vector<16x4xf32>
    %27 = arith.addf %1, %26 : vector<16x4xf32>
    %28 = arith.index_cast %arg0 : i32 to index
    %c1 = arith.constant 1 : index
    %29 = memref.load %arg1[%28, %c1] : memref<8x4xf32, #tpu.memory_space<smem>>
    %c1_15 = arith.constant 1 : index
    %c0_16 = arith.constant 0 : index
    %c0_17 = arith.constant 0 : index
    %30 = vector.load %arg2[%c1_15, %c0_16, %c0_17] : memref<4x16x16xf32, #tpu.memory_space<vmem>>, vector<1x16x16xf32>
    %31 = vector.shape_cast %30 : vector<1x16x16xf32> to vector<16x16xf32>
    %32 = arith.negf %31 : vector<16x16xf32>
    %33 = math.exp %32 : vector<16x16xf32>
    %cst_18 = arith.constant 1.000000e+00 : f32
    %34 = vector.broadcast %cst_18 : f32 to vector<16x16xf32>
    %35 = arith.addf %34, %33 : vector<16x16xf32>
    %36 = arith.divf %34, %35 : vector<16x16xf32>
    %37 = arith.truncf %36 : vector<16x16xf32> to vector<16x16xbf16>
    %c0_19 = arith.constant 0 : index
    %c1_20 = arith.constant 1 : index
    %c0_21 = arith.constant 0 : index
    %c0_22 = arith.constant 0 : index
    %38 = vector.load %arg4[%c0_19, %c1_20, %c0_21, %c0_22] : memref<1x4x16x16xf32, #tpu.memory_space<vmem>>, vector<1x1x16x16xf32>
    %39 = vector.shape_cast %38 : vector<1x1x16x16xf32> to vector<16x16xf32>
    %40 = arith.truncf %39 : vector<16x16xf32> to vector<16x16xbf16>
    %c1_23 = arith.constant 1 : index
    %c0_24 = arith.constant 0 : index
    %c0_25 = arith.constant 0 : index
    %41 = vector.load %arg3[%c1_23, %c0_24, %c0_25] : memref<4x16x4xf32, #tpu.memory_space<vmem>>, vector<1x16x4xf32>
    %42 = vector.shape_cast %41 : vector<1x16x4xf32> to vector<16x4xf32>
    %43 = arith.truncf %42 : vector<16x4xf32> to vector<16x4xbf16>
    %cst_26 = arith.constant dense<0.000000e+00> : vector<16x16xf32>
    %44 = tpu.matmul %40, %37, %cst_26 {dimension_numbers = #tpu.dot_dimension_numbers<[1], [0], [0], [1], [0, 0, 1, 1], [], []>} : vector<16x16xbf16>, vector<16x16xbf16>, vector<16x16xf32> -> vector<16x16xf32>
    %45 = arith.truncf %44 : vector<16x16xf32> to vector<16x16xbf16>
    %cst_27 = arith.constant dense<0.000000e+00> : vector<16x16xf32>
    %46 = tpu.matmul %45, %40, %cst_27 {dimension_numbers = #tpu.dot_dimension_numbers<[1], [1], [0], [0], [0, 0, 1, 0], [], []>} : vector<16x16xbf16>, vector<16x16xbf16>, vector<16x16xf32> -> vector<16x16xf32>
    %cst_28 = arith.constant dense<0.000000e+00> : vector<16x4xf32>
    %47 = tpu.matmul %40, %43, %cst_28 {dimension_numbers = #tpu.dot_dimension_numbers<[1], [0], [0], [1], [0, 0, 1, 1], [], []>} : vector<16x16xbf16>, vector<16x4xbf16>, vector<16x4xf32> -> vector<16x4xf32>
    %48 = vector.broadcast %29 : f32 to vector<16x16xf32>
    %49 = arith.mulf %48, %46 : vector<16x16xf32>
    %50 = arith.addf %24, %49 : vector<16x16xf32>
    %51 = vector.broadcast %29 : f32 to vector<16x4xf32>
    %52 = arith.mulf %51, %47 : vector<16x4xf32>
    %53 = arith.addf %27, %52 : vector<16x4xf32>
    %54 = arith.index_cast %arg0 : i32 to index
    %c2 = arith.constant 2 : index
    %55 = memref.load %arg1[%54, %c2] : memref<8x4xf32, #tpu.memory_space<smem>>
    %c2_29 = arith.constant 2 : index
    %c0_30 = arith.constant 0 : index
    %c0_31 = arith.constant 0 : index
    %56 = vector.load %arg2[%c2_29, %c0_30, %c0_31] : memref<4x16x16xf32, #tpu.memory_space<vmem>>, vector<1x16x16xf32>
    %57 = vector.shape_cast %56 : vector<1x16x16xf32> to vector<16x16xf32>
    %58 = arith.negf %57 : vector<16x16xf32>
    %59 = math.exp %58 : vector<16x16xf32>
    %cst_32 = arith.constant 1.000000e+00 : f32
    %60 = vector.broadcast %cst_32 : f32 to vector<16x16xf32>
    %61 = arith.addf %60, %59 : vector<16x16xf32>
    %62 = arith.divf %60, %61 : vector<16x16xf32>
    %63 = arith.truncf %62 : vector<16x16xf32> to vector<16x16xbf16>
    %c0_33 = arith.constant 0 : index
    %c2_34 = arith.constant 2 : index
    %c0_35 = arith.constant 0 : index
    %c0_36 = arith.constant 0 : index
    %64 = vector.load %arg4[%c0_33, %c2_34, %c0_35, %c0_36] : memref<1x4x16x16xf32, #tpu.memory_space<vmem>>, vector<1x1x16x16xf32>
    %65 = vector.shape_cast %64 : vector<1x1x16x16xf32> to vector<16x16xf32>
    %66 = arith.truncf %65 : vector<16x16xf32> to vector<16x16xbf16>
    %c2_37 = arith.constant 2 : index
    %c0_38 = arith.constant 0 : index
    %c0_39 = arith.constant 0 : index
    %67 = vector.load %arg3[%c2_37, %c0_38, %c0_39] : memref<4x16x4xf32, #tpu.memory_space<vmem>>, vector<1x16x4xf32>
    %68 = vector.shape_cast %67 : vector<1x16x4xf32> to vector<16x4xf32>
    %69 = arith.truncf %68 : vector<16x4xf32> to vector<16x4xbf16>
    %cst_40 = arith.constant dense<0.000000e+00> : vector<16x16xf32>
    %70 = tpu.matmul %66, %63, %cst_40 {dimension_numbers = #tpu.dot_dimension_numbers<[1], [0], [0], [1], [0, 0, 1, 1], [], []>} : vector<16x16xbf16>, vector<16x16xbf16>, vector<16x16xf32> -> vector<16x16xf32>
    %71 = arith.truncf %70 : vector<16x16xf32> to vector<16x16xbf16>
    %cst_41 = arith.constant dense<0.000000e+00> : vector<16x16xf32>
    %72 = tpu.matmul %71, %66, %cst_41 {dimension_numbers = #tpu.dot_dimension_numbers<[1], [1], [0], [0], [0, 0, 1, 0], [], []>} : vector<16x16xbf16>, vector<16x16xbf16>, vector<16x16xf32> -> vector<16x16xf32>
    %cst_42 = arith.constant dense<0.000000e+00> : vector<16x4xf32>
    %73 = tpu.matmul %66, %69, %cst_42 {dimension_numbers = #tpu.dot_dimension_numbers<[1], [0], [0], [1], [0, 0, 1, 1], [], []>} : vector<16x16xbf16>, vector<16x4xbf16>, vector<16x4xf32> -> vector<16x4xf32>
    %74 = vector.broadcast %55 : f32 to vector<16x16xf32>
    %75 = arith.mulf %74, %72 : vector<16x16xf32>
    %76 = arith.addf %50, %75 : vector<16x16xf32>
    %77 = vector.broadcast %55 : f32 to vector<16x4xf32>
    %78 = arith.mulf %77, %73 : vector<16x4xf32>
    %79 = arith.addf %53, %78 : vector<16x4xf32>
    %80 = arith.index_cast %arg0 : i32 to index
    %c3 = arith.constant 3 : index
    %81 = memref.load %arg1[%80, %c3] : memref<8x4xf32, #tpu.memory_space<smem>>
    %c3_43 = arith.constant 3 : index
    %c0_44 = arith.constant 0 : index
    %c0_45 = arith.constant 0 : index
    %82 = vector.load %arg2[%c3_43, %c0_44, %c0_45] : memref<4x16x16xf32, #tpu.memory_space<vmem>>, vector<1x16x16xf32>
    %83 = vector.shape_cast %82 : vector<1x16x16xf32> to vector<16x16xf32>
    %84 = arith.negf %83 : vector<16x16xf32>
    %85 = math.exp %84 : vector<16x16xf32>
    %cst_46 = arith.constant 1.000000e+00 : f32
    %86 = vector.broadcast %cst_46 : f32 to vector<16x16xf32>
    %87 = arith.addf %86, %85 : vector<16x16xf32>
    %88 = arith.divf %86, %87 : vector<16x16xf32>
    %89 = arith.truncf %88 : vector<16x16xf32> to vector<16x16xbf16>
    %c0_47 = arith.constant 0 : index
    %c3_48 = arith.constant 3 : index
    %c0_49 = arith.constant 0 : index
    %c0_50 = arith.constant 0 : index
    %90 = vector.load %arg4[%c0_47, %c3_48, %c0_49, %c0_50] : memref<1x4x16x16xf32, #tpu.memory_space<vmem>>, vector<1x1x16x16xf32>
    %91 = vector.shape_cast %90 : vector<1x1x16x16xf32> to vector<16x16xf32>
    %92 = arith.truncf %91 : vector<16x16xf32> to vector<16x16xbf16>
    %c3_51 = arith.constant 3 : index
    %c0_52 = arith.constant 0 : index
    %c0_53 = arith.constant 0 : index
    %93 = vector.load %arg3[%c3_51, %c0_52, %c0_53] : memref<4x16x4xf32, #tpu.memory_space<vmem>>, vector<1x16x4xf32>
    %94 = vector.shape_cast %93 : vector<1x16x4xf32> to vector<16x4xf32>
    %95 = arith.truncf %94 : vector<16x4xf32> to vector<16x4xbf16>
    %cst_54 = arith.constant dense<0.000000e+00> : vector<16x16xf32>
    %96 = tpu.matmul %92, %89, %cst_54 {dimension_numbers = #tpu.dot_dimension_numbers<[1], [0], [0], [1], [0, 0, 1, 1], [], []>} : vector<16x16xbf16>, vector<16x16xbf16>, vector<16x16xf32> -> vector<16x16xf32>
    %97 = arith.truncf %96 : vector<16x16xf32> to vector<16x16xbf16>
    %cst_55 = arith.constant dense<0.000000e+00> : vector<16x16xf32>
    %98 = tpu.matmul %97, %92, %cst_55 {dimension_numbers = #tpu.dot_dimension_numbers<[1], [1], [0], [0], [0, 0, 1, 0], [], []>} : vector<16x16xbf16>, vector<16x16xbf16>, vector<16x16xf32> -> vector<16x16xf32>
    %cst_56 = arith.constant dense<0.000000e+00> : vector<16x4xf32>
    %99 = tpu.matmul %92, %95, %cst_56 {dimension_numbers = #tpu.dot_dimension_numbers<[1], [0], [0], [1], [0, 0, 1, 1], [], []>} : vector<16x16xbf16>, vector<16x4xbf16>, vector<16x4xf32> -> vector<16x4xf32>
    %100 = vector.broadcast %81 : f32 to vector<16x16xf32>
    %101 = arith.mulf %100, %98 : vector<16x16xf32>
    %102 = arith.addf %76, %101 : vector<16x16xf32>
    %103 = vector.broadcast %81 : f32 to vector<16x4xf32>
    %104 = arith.mulf %103, %99 : vector<16x4xf32>
    %105 = arith.addf %79, %104 : vector<16x4xf32>
    %c0_57 = arith.constant 0 : index
    %c0_58 = arith.constant 0 : index
    %c0_59 = arith.constant 0 : index
    %106 = vector.load %arg5[%c0_57, %c0_58, %c0_59] : memref<1x16x1xf32, #tpu.memory_space<vmem>>, vector<1x16x1xf32>
    %107 = vector.shape_cast %106 : vector<1x16x1xf32> to vector<16x1xf32>
    %108 = tpu.reciprocal %107 : vector<16x1xf32> -> vector<16x1xf32>
    %c0_60 = arith.constant 0 : index
    %c0_61 = arith.constant 0 : index
    %c0_62 = arith.constant 0 : index
    %109 = vector.load %arg6[%c0_60, %c0_61, %c0_62] : memref<1x1x16xf32, #tpu.memory_space<vmem>>, vector<1x1x16xf32>
    %110 = vector.shape_cast %109 : vector<1x1x16xf32> to vector<1x16xf32>
    %111 = tpu.reciprocal %110 : vector<1x16xf32> -> vector<1x16xf32>
    %112 = vector.broadcast %108 : vector<16x1xf32> to vector<16x16xf32>
    %113 = arith.mulf %102, %112 : vector<16x16xf32>
    %114 = vector.broadcast %111 : vector<1x16xf32> to vector<16x16xf32>
    %115 = arith.mulf %113, %114 : vector<16x16xf32>
    %116 = vector.broadcast %108 : vector<16x1xf32> to vector<16x4xf32>
    %117 = arith.mulf %105, %116 : vector<16x4xf32>
    %c0_63 = arith.constant 0 : index
    %c0_64 = arith.constant 0 : index
    %c0_65 = arith.constant 0 : index
    %118 = vector.load %arg10[%c0_63, %c0_64, %c0_65] : memref<1x16x16xf32, #tpu.memory_space<vmem>>, vector<1x16x16xf32>
    %119 = vector.shape_cast %118 : vector<1x16x16xf32> to vector<16x16xf32>
    %120 = vector.shape_cast %115 : vector<16x16xf32> to vector<1x16x16xf32>
    tpu.vector_store %arg10[%c0_63, %c0_64, %c0_65], %120 {strides = array<i32>} : memref<1x16x16xf32, #tpu.memory_space<vmem>>, vector<1x16x16xf32>,
    %c0_66 = arith.constant 0 : index
    %c0_67 = arith.constant 0 : index
    %c0_68 = arith.constant 0 : index
    %121 = vector.load %arg11[%c0_66, %c0_67, %c0_68] : memref<1x16x4xf32, #tpu.memory_space<vmem>>, vector<1x16x4xf32>
    %122 = vector.shape_cast %121 : vector<1x16x4xf32> to vector<16x4xf32>
    %123 = vector.shape_cast %117 : vector<16x4xf32> to vector<1x16x4xf32>
    tpu.vector_store %arg11[%c0_66, %c0_67, %c0_68], %123 {strides = array<i32>} : memref<1x16x4xf32, #tpu.memory_space<vmem>>, vector<1x16x4xf32>,
    %c0_69 = arith.constant 0 : index
    %c0_70 = arith.constant 0 : index
    %c0_71 = arith.constant 0 : index
    %124 = vector.load %arg7[%c0_69, %c0_70, %c0_71] : memref<1x16x16xf32, #tpu.memory_space<vmem>>, vector<1x16x16xf32>
    %125 = vector.shape_cast %124 : vector<1x16x16xf32> to vector<16x16xf32>
    %c0_72 = arith.constant 0 : index
    %c0_73 = arith.constant 0 : index
    %c0_74 = arith.constant 0 : index
    %126 = vector.load %arg9[%c0_72, %c0_73, %c0_74] : memref<1x16x16xf32, #tpu.memory_space<vmem>>, vector<1x16x16xf32>
    %127 = vector.shape_cast %126 : vector<1x16x16xf32> to vector<16x16xf32>
    %c0_75 = arith.constant 0 : index
    %c0_76 = arith.constant 0 : index
    %c0_77 = arith.constant 0 : index
    %128 = vector.load %arg8[%c0_75, %c0_76, %c0_77] : memref<1x16x4xf32, #tpu.memory_space<vmem>>, vector<1x16x4xf32>
    %129 = vector.shape_cast %128 : vector<1x16x4xf32> to vector<16x4xf32>
    %c0_78 = arith.constant 0 : index
    %c0_79 = arith.constant 0 : index
    %c0_80 = arith.constant 0 : index
    %130 = vector.load %arg5[%c0_78, %c0_79, %c0_80] : memref<1x16x1xf32, #tpu.memory_space<vmem>>, vector<1x16x1xf32>
    %131 = vector.shape_cast %130 : vector<1x16x1xf32> to vector<16x1xf32>
    %c0_81 = arith.constant 0 : index
    %c0_82 = arith.constant 0 : index
    %c0_83 = arith.constant 0 : index
    %132 = vector.load %arg6[%c0_81, %c0_82, %c0_83] : memref<1x1x16xf32, #tpu.memory_space<vmem>>, vector<1x1x16xf32>
    %133 = vector.shape_cast %132 : vector<1x1x16xf32> to vector<1x16xf32>
    %134 = arith.mulf %125, %125 : vector<16x16xf32>
    %cst_84 = arith.constant dense<0.000000e+00> : vector<16x1xf32>
    %135 = tpu.matmul %134, %131, %cst_84 {dimension_numbers = #tpu.dot_dimension_numbers<[1], [0], [0], [1], [0, 0, 1, 1], [], []>} : vector<16x16xf32>, vector<16x1xf32>, vector<16x1xf32> -> vector<16x1xf32>
    %136 = arith.mulf %115, %115 : vector<16x16xf32>
    %cst_85 = arith.constant dense<0.000000e+00> : vector<1x16xf32>
    %137 = tpu.matmul %133, %136, %cst_85 {dimension_numbers = #tpu.dot_dimension_numbers<[1], [1], [0], [0], [0, 0, 1, 0], [], []>} : vector<1x16xf32>, vector<16x16xf32>, vector<1x16xf32> -> vector<1x16xf32>
    %138 = arith.truncf %125 : vector<16x16xf32> to vector<16x16xbf16>
    %139 = arith.truncf %127 : vector<16x16xf32> to vector<16x16xbf16>
    %cst_86 = arith.constant dense<0.000000e+00> : vector<16x16xf32>
    %140 = tpu.matmul %138, %139, %cst_86 {dimension_numbers = #tpu.dot_dimension_numbers<[1], [0], [0], [1], [0, 0, 1, 1], [], []>} : vector<16x16xbf16>, vector<16x16xbf16>, vector<16x16xf32> -> vector<16x16xf32>
    %141 = arith.truncf %140 : vector<16x16xf32> to vector<16x16xbf16>
    %142 = arith.truncf %115 : vector<16x16xf32> to vector<16x16xbf16>
    %cst_87 = arith.constant dense<0.000000e+00> : vector<16x16xf32>
    %143 = tpu.matmul %141, %142, %cst_87 {dimension_numbers = #tpu.dot_dimension_numbers<[1], [1], [0], [0], [0, 0, 1, 0], [], []>} : vector<16x16xbf16>, vector<16x16xbf16>, vector<16x16xf32> -> vector<16x16xf32>
    %144 = vector.broadcast %135 : vector<16x1xf32> to vector<16x16xf32>
    %145 = vector.broadcast %137 : vector<1x16xf32> to vector<16x16xf32>
    %146 = arith.addf %144, %145 : vector<16x16xf32>
    %cst_88 = arith.constant 2.000000e+00 : f32
    %147 = vector.broadcast %cst_88 : f32 to vector<16x16xf32>
    %148 = arith.mulf %147, %143 : vector<16x16xf32>
    %149 = arith.subf %146, %148 : vector<16x16xf32>
    %150 = arith.mulf %129, %129 : vector<16x4xf32>
    %cst_89 = arith.constant dense<0.000000e+00> : vector<16xf32>
    %151 = vector.multi_reduction <add>, %150, %cst_89 [1] : vector<16x4xf32> to vector<16xf32>
    %152 = vector.shape_cast %151 : vector<16xf32> to vector<16x1xf32>
    %cst_90 = arith.constant 9.99999996E-13 : f32
    %153 = vector.broadcast %cst_90 : f32 to vector<16x1xf32>
    %154 = arith.addf %152, %153 : vector<16x1xf32>
    %155 = math.rsqrt %154 : vector<16x1xf32>
    %156 = arith.mulf %117, %117 : vector<16x4xf32>
    %cst_91 = arith.constant dense<0.000000e+00> : vector<16xf32>
    %157 = vector.multi_reduction <add>, %156, %cst_91 [1] : vector<16x4xf32> to vector<16xf32>
    %158 = vector.shape_cast %157 : vector<16xf32> to vector<16x1xf32>
    %cst_92 = arith.constant 9.99999996E-13 : f32
    %159 = vector.broadcast %cst_92 : f32 to vector<16x1xf32>
    %160 = arith.addf %158, %159 : vector<16x1xf32>
    %161 = math.rsqrt %160 : vector<16x1xf32>
    %162 = vector.broadcast %155 : vector<16x1xf32> to vector<16x4xf32>
    %163 = arith.mulf %129, %162 : vector<16x4xf32>
    %164 = arith.truncf %163 : vector<16x4xf32> to vector<16x4xbf16>
    %165 = vector.broadcast %161 : vector<16x1xf32> to vector<16x4xf32>
    %166 = arith.mulf %117, %165 : vector<16x4xf32>
    %167 = arith.truncf %166 : vector<16x4xf32> to vector<16x4xbf16>
    %cst_93 = arith.constant dense<0.000000e+00> : vector<16x16xf32>
    %168 = tpu.matmul %164, %167, %cst_93 {dimension_numbers = #tpu.dot_dimension_numbers<[1], [1], [0], [0], [0, 0, 1, 0], [], []>} : vector<16x4xbf16>, vector<16x4xbf16>, vector<16x16xf32> -> vector<16x16xf32>
    %cst_94 = arith.constant 1.000000e+00 : f32
    %169 = vector.broadcast %cst_94 : f32 to vector<16x16xf32>
    %170 = arith.subf %169, %168 : vector<16x16xf32>
    %cst_95 = arith.constant 5.000000e-01 : f32
    %171 = vector.broadcast %cst_95 : f32 to vector<16x16xf32>
    %172 = arith.mulf %171, %170 : vector<16x16xf32>
    %173 = arith.addf %149, %172 : vector<16x16xf32>
    %174 = arith.mulf %173, %127 : vector<16x16xf32>
    %175 = vector.shape_cast %174 : vector<16x16xf32> to vector<1x16x16xf32>
    %cst_96 = arith.constant dense<0.000000e+00> : vector<1xf32>
    %176 = vector.multi_reduction <add>, %175, %cst_96 [1, 2] : vector<1x16x16xf32> to vector<1xf32>
    %177 = vector.shape_cast %176 : vector<1xf32> to vector<1x1x1xf32>
    %178 = vector.extract %177[0, 0, 0] : f32 from vector<1x1x1xf32>
    %179 = vector.broadcast %178 : f32 to vector<1x1xf32>
    %c0_97 = arith.constant 0 : index
    %c0_98 = arith.constant 0 : index
    %c0_99 = arith.constant 0 : index
    %180 = vector.load %arg12[%c0_97, %c0_98, %c0_99] : memref<1x1x1xf32, #tpu.memory_space<vmem>>, vector<1x1x1xf32>
    %181 = vector.shape_cast %180 : vector<1x1x1xf32> to vector<1x1xf32>
    %182 = vector.shape_cast %179 : vector<1x1xf32> to vector<1x1x1xf32>
    tpu.vector_store %arg12[%c0_97, %c0_98, %c0_99], %182 {strides = array<i32>} : memref<1x1x1xf32, #tpu.memory_space<vmem>>, vector<1x1x1xf32>,
    return
  }
  func.func @transform_0(%arg0: i32) -> (i32, i32) {
    %c0_i32 = arith.constant 0 : i32
    %c0_i32_0 = arith.constant 0 : i32
    %c0_i32_1 = arith.constant 0 : i32
    return %c0_i32, %c0_i32_0 : i32, i32
  }
  func.func @transform_1(%arg0: i32) -> (i32, i32, i32) {
    %c0_i32 = arith.constant 0 : i32
    %c0_i32_0 = arith.constant 0 : i32
    %c0_i32_1 = arith.constant 0 : i32
    %c0_i32_2 = arith.constant 0 : i32
    return %c0_i32, %c0_i32_0, %c0_i32_1 : i32, i32, i32
  }
  func.func @transform_2(%arg0: i32) -> (i32, i32, i32) {
    %c0_i32 = arith.constant 0 : i32
    %c0_i32_0 = arith.constant 0 : i32
    %c0_i32_1 = arith.constant 0 : i32
    %c0_i32_2 = arith.constant 0 : i32
    return %c0_i32, %c0_i32_0, %c0_i32_1 : i32, i32, i32
  }
  func.func @transform_3(%arg0: i32) -> (i32, i32, i32, i32) {
    %c0_i32 = arith.constant 0 : i32
    %c0_i32_0 = arith.constant 0 : i32
    %c0_i32_1 = arith.constant 0 : i32
    %c0_i32_2 = arith.constant 0 : i32
    return %arg0, %c0_i32, %c0_i32_0, %c0_i32_1 : i32, i32, i32, i32
  }
  func.func @transform_4(%arg0: i32) -> (i32, i32, i32) {
    %c0_i32 = arith.constant 0 : i32
    %c0_i32_0 = arith.constant 0 : i32
    %c0_i32_1 = arith.constant 0 : i32
    return %arg0, %c0_i32, %c0_i32_0 : i32, i32, i32
  }
  func.func @transform_5(%arg0: i32) -> (i32, i32, i32) {
    %c0_i32 = arith.constant 0 : i32
    %c0_i32_0 = arith.constant 0 : i32
    %c0_i32_1 = arith.constant 0 : i32
    return %arg0, %c0_i32, %c0_i32_0 : i32, i32, i32
  }
  func.func @transform_6(%arg0: i32) -> (i32, i32, i32) {
    %c0_i32 = arith.constant 0 : i32
    %c0_i32_0 = arith.constant 0 : i32
    %c0_i32_1 = arith.constant 0 : i32
    return %arg0, %c0_i32, %c0_i32_0 : i32, i32, i32
  }
  func.func @transform_7(%arg0: i32) -> (i32, i32, i32) {
    %c0_i32 = arith.constant 0 : i32
    %c0_i32_0 = arith.constant 0 : i32
    %c0_i32_1 = arith.constant 0 : i32
    return %arg0, %c0_i32, %c0_i32_0 : i32, i32, i32
  }
  func.func @transform_8(%arg0: i32) -> (i32, i32, i32) {
    %c0_i32 = arith.constant 0 : i32
    %c0_i32_0 = arith.constant 0 : i32
    %c0_i32_1 = arith.constant 0 : i32
    return %arg0, %c0_i32, %c0_i32_0 : i32, i32, i32
  }
  func.func @transform_9(%arg0: i32) -> (i32, i32, i32) {
    %c0_i32 = arith.constant 0 : i32
    %c0_i32_0 = arith.constant 0 : i32
    %c0_i32_1 = arith.constant 0 : i32
    return %arg0, %c0_i32, %c0_i32_0 : i32, i32, i32
  }
  func.func @transform_10(%arg0: i32) -> (i32, i32, i32) {
    %c0_i32 = arith.constant 0 : i32
    %c0_i32_0 = arith.constant 0 : i32
    %c0_i32_1 = arith.constant 0 : i32
    return %arg0, %c0_i32, %c0_i32_0 : i32, i32, i32
  }
  func.func @transform_11(%arg0: i32) -> (i32, i32, i32) {
    %c0_i32 = arith.constant 0 : i32
    %c0_i32_0 = arith.constant 0 : i32
    %c0_i32_1 = arith.constant 0 : i32
    return %arg0, %c0_i32, %c0_i32_0 : i32, i32, i32
  }
}

</mosaic_0001>

<llo_original>
// kernel: _fgwf_forward_batch_impl.1
$region0: #{_fgwf_forward_batch_impl.1}
  #allocation0 [shape = 'u32[]', space=smem, size = 0x4, offset = 0x4, fixed_abs, tag = 'smem constant byte address 0x4 - core index']
  #allocation1 [shape = 'u32[72,128]{1,0:T(1,128)}', space=vmem, size = 0x9000, scoped, tag = 'internal scratch']
  %s0 = inlined_call_operand.vmem [shape: f32[8,4], index: 0, kind: input, shape index: {}]
  %s1 = inlined_call_operand.vmem [shape: f32[4,16,16], index: 1, kind: input, shape index: {}]
  %s2 = inlined_call_operand.vmem [shape: f32[4,16,4], index: 2, kind: input, shape index: {}]
  %s3 = inlined_call_operand.vmem [shape: f32[8,4,16,16], index: 3, kind: input, shape index: {}]
  %s4 = inlined_call_operand.vmem [shape: f32[8,16,1], index: 4, kind: input, shape index: {}]
  %s5 = inlined_call_operand.vmem [shape: f32[8,1,16], index: 5, kind: input, shape index: {}]
  %s6 = inlined_call_operand.vmem [shape: f32[8,16,16], index: 6, kind: input, shape index: {}]
  %s7 = inlined_call_operand.vmem [shape: f32[8,16,4], index: 7, kind: input, shape index: {}]
  %s8 = inlined_call_operand.vmem [shape: f32[8,16,16], index: 8, kind: input, shape index: {}]
  %s9 = inlined_call_operand.hbm [shape: f32[8,16,16], index: 9, kind: output, shape index: {0}]
  %s10 = inlined_call_operand.vmem [shape: f32[8,16,4], index: 10, kind: output, shape index: {1}]
  %s11 = inlined_call_operand.vmem [shape: f32[8,1,1], index: 11, kind: output, shape index: {2}]
  %12 = xla_tuple %s9, %s10, %s11
  %s13 = sld [smem:[#allocation0]]
  $region89: #{_fgwf_forward_batch_impl.1} parent=0
    _
  %s15 = ssub.s32 1, %s13
  %s16 = scalar_select 0, %s15, %s13
  $region1: #{_fgwf_forward_batch_impl.1} parent=0
    #allocation2 [shape = 'u8[4096]{0}', space=smem, size = 0x1000, scoped, tag = 'input window, operand 0, single buffered']
    #allocation3 [shape = 's32[2]{0}', space=sflag, size = 0x8, scoped, tag = 'scoped memory for _fgwf_forward_batch_impl.1']
    #allocation4 [shape = 's32[2]{0}', space=sflag, size = 0x8, scoped, tag = 'scoped memory for _fgwf_forward_batch_impl.1']
    #allocation5 [shape = 'u8[16384]{0}', space=vmem, size = 0x4000, scoped, tag = 'output window, operand 0']
    %17 = vsyncpa [#allocation4], 0
    %18 = vsyncpa [#allocation3], 0
    %s19 = scalar_lea.sflag [#allocation3], 1
    %20 = vsyncpa %s19, 0
    loop: start=0, step=1, limit=10
    $region2: #{_fgwf_forward_batch_impl.1} parent=1 // loop_pre_header
      _
    $region3: #{_fgwf_forward_batch_impl.1} parent=1 // loop_header
      %s22 = sphi 0, %s26
      %p23 = scmp.ge.s32.totalorder %s22, 10
      %s30 = sphi 0, %s30
      %s32 = sphi 0, %s30
      %s33 = sphi 0, %s32
      %s47 = sphi 0, %s33
      %s51 = sphi 0, %s51
      %s53 = sphi 0, %s51
      %s54 = sphi 0, %s53
      %s68 = sphi 0, %s54
      %s72 = sphi 0, %s72
      %s74 = sphi 0, %s72
      %s75 = sphi 0, %s74
      %s89 = sphi 0, %s75
      %s95 = sphi 0, %s97
      %s98 = sphi 0, %s95
      %s99 = sphi 0, %s98
      %s115 = sphi 0, %s99
      %s121 = sphi 0, %s123
      %s124 = sphi 0, %s121
      %s125 = sphi 0, %s124
      %s141 = sphi 0, %s125
      %s147 = sphi 0, %s149
      %s150 = sphi 0, %s147
      %s151 = sphi 0, %s150
      %s167 = sphi 0, %s151
      %s173 = sphi 0, %s175
      %s176 = sphi 0, %s173
      %s177 = sphi 0, %s176
      %s193 = sphi 0, %s177
      %s199 = sphi 0, %s201
      %s202 = sphi 0, %s199
      %s203 = sphi 0, %s202
      %s219 = sphi 0, %s203
      %s225 = sphi 0, %s227
      %s228 = sphi 0, %s225
      %s229 = sphi 0, %s228
      %s245 = sphi 0, %s229
      %s251 = sphi 0, %s253
      %s254 = sphi 0, %s251
      %s255 = sphi 0, %s254
      %s271 = sphi 0, %s255
      %s277 = sphi 0, %s279
      %s280 = sphi 0, %s277
      %s281 = sphi 0, %s280
      %s297 = sphi 0, %s281
      %s303 = sphi 0, %s305
      %s306 = sphi 0, %s303
      %s307 = sphi 0, %s306
      %s323 = sphi 0, %s307
    $region4: #{_fgwf_forward_batch_impl.1} parent=1 // loop_header_branch
      %25 = sbr.rel (%p23) target = $region8
    $region5: #{_fgwf_forward_batch_impl.1} parent=1 // loop_body
      %s27 = ssub.s32 %s22, 1
      %s28 = ssub.s32 %s22, 2
      %s29 = sadd.s32 %s22, 1
      %s31 = sadd.s32 %s30, 1
      %p34 = scmp.eq.s32.totalorder %s22, 7
      %p35 = scmp.ne.s32.totalorder %s30, %s32
      %p36 = scmp.eq.s32.totalorder %s22, 0
      %p37 = por %p35, %p36
      %p38 = scmp.ne.s32.totalorder %s30, %s32
      %p39 = scmp.eq.s32.totalorder %s27, 7
      %p40 = por %p38, %p39
      %p41 = scmp.ne.s32.totalorder %s32, %s33
      %p42 = scmp.eq.s32.totalorder %s27, 0
      %p43 = por %p41, %p42
      %p44 = scmp.ne.s32.totalorder %s32, %s33
      %p45 = scmp.eq.s32.totalorder %s28, 7
      %p46 = por %p44, %p45
      %p48 = scmp.ne.s32.totalorder %s33, %s47
      %p49 = scmp.eq.s32.totalorder %s28, 0
      %p50 = por %p48, %p49
      %s52 = sadd.s32 %s51, 1
      %p55 = scmp.eq.s32.totalorder %s22, 7
      %p56 = scmp.ne.s32.totalorder %s51, %s53
      %p57 = scmp.eq.s32.totalorder %s22, 0
      %p58 = por %p56, %p57
      %p59 = scmp.ne.s32.totalorder %s51, %s53
      %p60 = scmp.eq.s32.totalorder %s27, 7
      %p61 = por %p59, %p60
      %p62 = scmp.ne.s32.totalorder %s53, %s54
      %p63 = scmp.eq.s32.totalorder %s27, 0
      %p64 = por %p62, %p63
      %p65 = scmp.ne.s32.totalorder %s53, %s54
      %p66 = scmp.eq.s32.totalorder %s28, 7
      %p67 = por %p65, %p66
      %p69 = scmp.ne.s32.totalorder %s54, %s68
      %p70 = scmp.eq.s32.totalorder %s28, 0
      %p71 = por %p69, %p70
      %s73 = sadd.s32 %s72, 1
      %p76 = scmp.eq.s32.totalorder %s22, 7
      %p77 = scmp.ne.s32.totalorder %s72, %s74
      %p78 = scmp.eq.s32.totalorder %s22, 0
      %p79 = por %p77, %p78
      %p80 = scmp.ne.s32.totalorder %s72, %s74
      %p81 = scmp.eq.s32.totalorder %s27, 7
      %p82 = por %p80, %p81
      %p83 = scmp.ne.s32.totalorder %s74, %s75
      %p84 = scmp.eq.s32.totalorder %s27, 0
      %p85 = por %p83, %p84
      %p86 = scmp.ne.s32.totalorder %s74, %s75
      %p87 = scmp.eq.s32.totalorder %s28, 7
      %p88 = por %p86, %p87
      %p90 = scmp.ne.s32.totalorder %s75, %s89
      %p91 = scmp.eq.s32.totalorder %s28, 0
      %p92 = por %p90, %p91
      %s93 = ssub.s32 %s22, %s29
      %p94 = scmp.eq.s32.totalorder %s93, 0
      %s96 = sadd.s32 %s95, 1
      %s97 = scalar_select %p94, %s95, %s96
      %p100 = pneg %p94
      %p101 = scmp.eq.s32.totalorder %s22, 7
      %p102 = por %p100, %p101
      %p103 = scmp.ne.s32.totalorder %s95, %s98
      %p104 = scmp.eq.s32.totalorder %s22, 0
      %p105 = por %p103, %p104
      %p106 = scmp.ne.s32.totalorder %s95, %s98
      %p107 = scmp.eq.s32.totalorder %s27, 7
      %p108 = por %p106, %p107
      %p109 = scmp.ne.s32.totalorder %s98, %s99
      %p110 = scmp.eq.s32.totalorder %s27, 0
      %p111 = por %p109, %p110
      %p112 = scmp.ne.s32.totalorder %s98, %s99
      %p113 = scmp.eq.s32.totalorder %s28, 7
      %p114 = por %p112, %p113
      %p116 = scmp.ne.s32.totalorder %s99, %s115
      %p117 = scmp.eq.s32.totalorder %s28, 0
      %p118 = por %p116, %p117
      %s119 = ssub.s32 %s22, %s29
      %p120 = scmp.eq.s32.totalorder %s119, 0
      %s122 = sadd.s32 %s121, 1
      %s123 = scalar_select %p120, %s121, %s122
      %p126 = pneg %p120
      %p127 = scmp.eq.s32.totalorder %s22, 7
      %p128 = por %p126, %p127
      %p129 = scmp.ne.s32.totalorder %s121, %s124
      %p130 = scmp.eq.s32.totalorder %s22, 0
      %p131 = por %p129, %p130
      %p132 = scmp.ne.s32.totalorder %s121, %s124
      %p133 = scmp.eq.s32.totalorder %s27, 7
      %p134 = por %p132, %p133
      %p135 = scmp.ne.s32.totalorder %s124, %s125
      %p136 = scmp.eq.s32.totalorder %s27, 0
      %p137 = por %p135, %p136
      %p138 = scmp.ne.s32.totalorder %s124, %s125
      %p139 = scmp.eq.s32.totalorder %s28, 7
      %p140 = por %p138, %p139
      %p142 = scmp.ne.s32.totalorder %s125, %s141
      %p143 = scmp.eq.s32.totalorder %s28, 0
      %p144 = por %p142, %p143
      %s145 = ssub.s32 %s22, %s29
      %p146 = scmp.eq.s32.totalorder %s145, 0
      %s148 = sadd.s32 %s147, 1
      %s149 = scalar_select %p146, %s147, %s148
      %p152 = pneg %p146
      %p153 = scmp.eq.s32.totalorder %s22, 7
      %p154 = por %p152, %p153
      %p155 = scmp.ne.s32.totalorder %s147, %s150
      %p156 = scmp.eq.s32.totalorder %s22, 0
      %p157 = por %p155, %p156
      %p158 = scmp.ne.s32.totalorder %s147, %s150
      %p159 = scmp.eq.s32.totalorder %s27, 7
      %p160 = por %p158, %p159
      %p161 = scmp.ne.s32.totalorder %s150, %s151
      %p162 = scmp.eq.s32.totalorder %s27, 0
      %p163 = por %p161, %p162
      %p164 = scmp.ne.s32.totalorder %s150, %s151
      %p165 = scmp.eq.s32.totalorder %s28, 7
      %p166 = por %p164, %p165
      %p168 = scmp.ne.s32.totalorder %s151, %s167
      %p169 = scmp.eq.s32.totalorder %s28, 0
      %p170 = por %p168, %p169
      %s171 = ssub.s32 %s22, %s29
      %p172 = scmp.eq.s32.totalorder %s171, 0
      %s174 = sadd.s32 %s173, 1
      %s175 = scalar_select %p172, %s173, %s174
      %p178 = pneg %p172
      %p179 = scmp.eq.s32.totalorder %s22, 7
      %p180 = por %p178, %p179
      %p181 = scmp.ne.s32.totalorder %s173, %s176
      %p182 = scmp.eq.s32.totalorder %s22, 0
      %p183 = por %p181, %p182
      %p184 = scmp.ne.s32.totalorder %s173, %s176
      %p185 = scmp.eq.s32.totalorder %s27, 7
      %p186 = por %p184, %p185
      %p187 = scmp.ne.s32.totalorder %s176, %s177
      %p188 = scmp.eq.s32.totalorder %s27, 0
      %p189 = por %p187, %p188
      %p190 = scmp.ne.s32.totalorder %s176, %s177
      %p191 = scmp.eq.s32.totalorder %s28, 7
      %p192 = por %p190, %p191
      %p194 = scmp.ne.s32.totalorder %s177, %s193
      %p195 = scmp.eq.s32.totalorder %s28, 0
      %p196 = por %p194, %p195
      %s197 = ssub.s32 %s22, %s29
      %p198 = scmp.eq.s32.totalorder %s197, 0
      %s200 = sadd.s32 %s199, 1
      %s201 = scalar_select %p198, %s199, %s200
      %p204 = pneg %p198
      %p205 = scmp.eq.s32.totalorder %s22, 7
      %p206 = por %p204, %p205
      %p207 = scmp.ne.s32.totalorder %s199, %s202
      %p208 = scmp.eq.s32.totalorder %s22, 0
      %p209 = por %p207, %p208
      %p210 = scmp.ne.s32.totalorder %s199, %s202
      %p211 = scmp.eq.s32.totalorder %s27, 7
      %p212 = por %p210, %p211
      %p213 = scmp.ne.s32.totalorder %s202, %s203
      %p214 = scmp.eq.s32.totalorder %s27, 0
      %p215 = por %p213, %p214
      %p216 = scmp.ne.s32.totalorder %s202, %s203
      %p217 = scmp.eq.s32.totalorder %s28, 7
      %p218 = por %p216, %p217
      %p220 = scmp.ne.s32.totalorder %s203, %s219
      %p221 = scmp.eq.s32.totalorder %s28, 0
      %p222 = por %p220, %p221
      %s223 = ssub.s32 %s22, %s29
      %p224 = scmp.eq.s32.totalorder %s223, 0
      %s226 = sadd.s32 %s225, 1
      %s227 = scalar_select %p224, %s225, %s226
      %p230 = pneg %p224
      %p231 = scmp.eq.s32.totalorder %s22, 7
      %p232 = por %p230, %p231
      %p233 = scmp.ne.s32.totalorder %s225, %s228
      %p234 = scmp.eq.s32.totalorder %s22, 0
      %p235 = por %p233, %p234
      %p236 = scmp.ne.s32.totalorder %s225, %s228
      %p237 = scmp.eq.s32.totalorder %s27, 7
      %p238 = por %p236, %p237
      %p239 = scmp.ne.s32.totalorder %s228, %s229
      %p240 = scmp.eq.s32.totalorder %s27, 0
      %p241 = por %p239, %p240
      %p242 = scmp.ne.s32.totalorder %s228, %s229
      %p243 = scmp.eq.s32.totalorder %s28, 7
      %p244 = por %p242, %p243
      %p246 = scmp.ne.s32.totalorder %s229, %s245
      %p247 = scmp.eq.s32.totalorder %s28, 0
      %p248 = por %p246, %p247
      %s249 = ssub.s32 %s22, %s29
      %p250 = scmp.eq.s32.totalorder %s249, 0
      %s252 = sadd.s32 %s251, 1
      %s253 = scalar_select %p250, %s251, %s252
      %p256 = pneg %p250
      %p257 = scmp.eq.s32.totalorder %s22, 7
      %p258 = por %p256, %p257
      %p259 = scmp.ne.s32.totalorder %s251, %s254
      %p260 = scmp.eq.s32.totalorder %s22, 0
      %p261 = por %p259, %p260
      %p262 = scmp.ne.s32.totalorder %s251, %s254
      %p263 = scmp.eq.s32.totalorder %s27, 7
      %p264 = por %p262, %p263
      %p265 = scmp.ne.s32.totalorder %s254, %s255
      %p266 = scmp.eq.s32.totalorder %s27, 0
      %p267 = por %p265, %p266
      %p268 = scmp.ne.s32.totalorder %s254, %s255
      %p269 = scmp.eq.s32.totalorder %s28, 7
      %p270 = por %p268, %p269
      %p272 = scmp.ne.s32.totalorder %s255, %s271
      %p273 = scmp.eq.s32.totalorder %s28, 0
      %p274 = por %p272, %p273
      %s275 = ssub.s32 %s22, %s29
      %p276 = scmp.eq.s32.totalorder %s275, 0
      %s278 = sadd.s32 %s277, 1
      %s279 = scalar_select %p276, %s277, %s278
      %p282 = pneg %p276
      %p283 = scmp.eq.s32.totalorder %s22, 7
      %p284 = por %p282, %p283
      %p285 = scmp.ne.s32.totalorder %s277, %s280
      %p286 = scmp.eq.s32.totalorder %s22, 0
      %p287 = por %p285, %p286
      %p288 = scmp.ne.s32.totalorder %s277, %s280
      %p289 = scmp.eq.s32.totalorder %s27, 7
      %p290 = por %p288, %p289
      %p291 = scmp.ne.s32.totalorder %s280, %s281
      %p292 = scmp.eq.s32.totalorder %s27, 0
      %p293 = por %p291, %p292
      %p294 = scmp.ne.s32.totalorder %s280, %s281
      %p295 = scmp.eq.s32.totalorder %s28, 7
      %p296 = por %p294, %p295
      %p298 = scmp.ne.s32.totalorder %s281, %s297
      %p299 = scmp.eq.s32.totalorder %s28, 0
      %p300 = por %p298, %p299
      %s301 = ssub.s32 %s22, %s29
      %p302 = scmp.eq.s32.totalorder %s301, 0
      %s304 = sadd.s32 %s303, 1
      %s305 = scalar_select %p302, %s303, %s304
      %p308 = pneg %p302
      %p309 = scmp.eq.s32.totalorder %s22, 7
      %p310 = por %p308, %p309
      %p311 = scmp.ne.s32.totalorder %s303, %s306
      %p312 = scmp.eq.s32.totalorder %s22, 0
      %p313 = por %p311, %p312
      %p314 = scmp.ne.s32.totalorder %s303, %s306
      %p315 = scmp.eq.s32.totalorder %s27, 7
      %p316 = por %p314, %p315
      %p317 = scmp.ne.s32.totalorder %s306, %s307
      %p318 = scmp.eq.s32.totalorder %s27, 0
      %p319 = por %p317, %p318
      %p320 = scmp.ne.s32.totalorder %s306, %s307
      %p321 = scmp.eq.s32.totalorder %s28, 7
      %p322 = por %p320, %p321
      %p324 = scmp.ne.s32.totalorder %s307, %s323
      %p325 = scmp.eq.s32.totalorder %s28, 0
      %p326 = por %p324, %p325
      %p327 = scmp.le.s32.totalorder 1, %s22
      %p328 = scmp.lt.s32.totalorder %s22, 9
      %p329 = pnand %p327, %p328
      %p330 = pneg %p329
      // Predicated region
      $region9: #{_fgwf_forward_batch_impl.1} parent=5 // pred_check
        _
      $region10: #{_fgwf_forward_batch_impl.1} parent=5 // pred_check_branch
        %332 = sbr.rel (%p329) target = $region12
      $region11: #{_fgwf_forward_batch_impl.1} parent=5 // pred_region
        %s333 = ssub.s32 %s22, 1
        // Predicated region
        $region13: #{_fgwf_forward_batch_impl.1} parent=11 // pred_check
          %p334 = pneg %p43
        $region14: #{_fgwf_forward_batch_impl.1} parent=11 // pred_check_branch
          %336 = sbr.rel (%p334) target = $region16
        $region15: #{_fgwf_forward_batch_impl.1} parent=11 // pred_region
          %338 = vsyncadd [#allocation4], 0
          %s340 = sshll.u32 %s0, 4
          %s341 = int_to_ptr.vmem [resolvable:$true] %s340
          %343 = dma.vmem_to_smem %s341, 128, [#allocation2], [#allocation4]
        $region16: #{_fgwf_forward_batch_impl.1} parent=11 // pred_fallthru
          _
        // Predicated region
        $region17: #{_fgwf_forward_batch_impl.1} parent=11 // pred_check
          %p344 = pneg %p64
        $region18: #{_fgwf_forward_batch_impl.1} parent=11 // pred_check_branch
          %346 = sbr.rel (%p344) target = $region20
        $region19: #{_fgwf_forward_batch_impl.1} parent=11 // pred_region
          _
        $region20: #{_fgwf_forward_batch_impl.1} parent=11 // pred_fallthru
          _
        // Predicated region
        $region21: #{_fgwf_forward_batch_impl.1} parent=11 // pred_check
          %p347 = pneg %p85
        $region22: #{_fgwf_forward_batch_impl.1} parent=11 // pred_check_branch
          %349 = sbr.rel (%p347) target = $region24
        $region23: #{_fgwf_forward_batch_impl.1} parent=11 // pred_region
          _
        $region24: #{_fgwf_forward_batch_impl.1} parent=11 // pred_fallthru
          _
      $region12: #{_fgwf_forward_batch_impl.1} parent=5 // pred_fallthru
        _
      %p350 = scmp.lt.s32.totalorder %s22, 8
      // Predicated region
      $region25: #{_fgwf_forward_batch_impl.1} parent=5 // pred_check
        %p351 = pneg %p350
      $region26: #{_fgwf_forward_batch_impl.1} parent=5 // pred_check_branch
        %353 = sbr.rel (%p351) target = $region28
      $region27: #{_fgwf_forward_batch_impl.1} parent=5 // pred_region
        // Predicated region
        $region29: #{_fgwf_forward_batch_impl.1} parent=27 // pred_check
          %p354 = pneg %p105
        $region30: #{_fgwf_forward_batch_impl.1} parent=27 // pred_check_branch
          %356 = sbr.rel (%p354) target = $region32
        $region31: #{_fgwf_forward_batch_impl.1} parent=27 // pred_region
          %p357 = scmp.lt.s32.totalorder %s22, 7
          %s358 = scalar_select %p357, %s22, 7
          %s359 = smul.addr %s358, 8
          %s360 = smul.addr %s359, 8
          %s361 = scalar_lea.vmem %s3, %s360
        $region32: #{_fgwf_forward_batch_impl.1} parent=27 // pred_fallthru
          _
        // Predicated region
        $region33: #{_fgwf_forward_batch_impl.1} parent=27 // pred_check
          %p362 = pneg %p131
        $region34: #{_fgwf_forward_batch_impl.1} parent=27 // pred_check_branch
          %364 = sbr.rel (%p362) target = $region36
        $region35: #{_fgwf_forward_batch_impl.1} parent=27 // pred_region
          %p365 = scmp.lt.s32.totalorder %s22, 7
          %s366 = scalar_select %p365, %s22, 7
          %s367 = smul.addr %s366, 2
          %s368 = smul.addr %s367, 8
          %s369 = scalar_lea.vmem %s4, %s368
        $region36: #{_fgwf_forward_batch_impl.1} parent=27 // pred_fallthru
          _
        // Predicated region
        $region37: #{_fgwf_forward_batch_impl.1} parent=27 // pred_check
          %p370 = pneg %p157
        $region38: #{_fgwf_forward_batch_impl.1} parent=27 // pred_check_branch
          %372 = sbr.rel (%p370) target = $region40
        $region39: #{_fgwf_forward_batch_impl.1} parent=27 // pred_region
          %p373 = scmp.lt.s32.totalorder %s22, 7
          %s374 = scalar_select %p373, %s22, 7
          %s375 = scalar_lea.vmem %s5, %s374
        $region40: #{_fgwf_forward_batch_impl.1} parent=27 // pred_fallthru
          _
        // Predicated region
        $region41: #{_fgwf_forward_batch_impl.1} parent=27 // pred_check
          %p376 = pneg %p183
        $region42: #{_fgwf_forward_batch_impl.1} parent=27 // pred_check_branch
          %378 = sbr.rel (%p376) target = $region44
        $region43: #{_fgwf_forward_batch_impl.1} parent=27 // pred_region
          %p379 = scmp.lt.s32.totalorder %s22, 7
          %s380 = scalar_select %p379, %s22, 7
          %s381 = smul.addr %s380, 2
          %s382 = smul.addr %s381, 8
          %s383 = scalar_lea.vmem %s6, %s382
        $region44: #{_fgwf_forward_batch_impl.1} parent=27 // pred_fallthru
          _
        // Predicated region
        $region45: #{_fgwf_forward_batch_impl.1} parent=27 // pred_check
          %p384 = pneg %p209
        $region46: #{_fgwf_forward_batch_impl.1} parent=27 // pred_check_branch
          %386 = sbr.rel (%p384) target = $region48
        $region47: #{_fgwf_forward_batch_impl.1} parent=27 // pred_region
          %p387 = scmp.lt.s32.totalorder %s22, 7
          %s388 = scalar_select %p387, %s22, 7
          %s389 = smul.addr %s388, 2
          %s390 = smul.addr %s389, 8
          %s391 = scalar_lea.vmem %s7, %s390
        $region48: #{_fgwf_forward_batch_impl.1} parent=27 // pred_fallthru
          _
        // Predicated region
        $region49: #{_fgwf_forward_batch_impl.1} parent=27 // pred_check
          %p392 = pneg %p235
        $region50: #{_fgwf_forward_batch_impl.1} parent=27 // pred_check_branch
          %394 = sbr.rel (%p392) target = $region52
        $region51: #{_fgwf_forward_batch_impl.1} parent=27 // pred_region
          %p395 = scmp.lt.s32.totalorder %s22, 7
          %s396 = scalar_select %p395, %s22, 7
          %s397 = smul.addr %s396, 2
          %s398 = smul.addr %s397, 8
          %s399 = scalar_lea.vmem %s8, %s398
        $region52: #{_fgwf_forward_batch_impl.1} parent=27 // pred_fallthru
          _
      $region28: #{_fgwf_forward_batch_impl.1} parent=5 // pred_fallthru
        _
      %p400 = scmp.le.s32.totalorder 1, %s22
      %p401 = scmp.lt.s32.totalorder %s22, 9
      %p402 = pnand %p400, %p401
      %p403 = pneg %p402
      // Predicated region
      $region53: #{_fgwf_forward_batch_impl.1} parent=5 // pred_check
        _
      $region54: #{_fgwf_forward_batch_impl.1} parent=5 // pred_check_branch
        %405 = sbr.rel (%p402) target = $region56
      $region55: #{_fgwf_forward_batch_impl.1} parent=5 // pred_region
        %s406 = ssub.s32 %s22, 1
        // Predicated region
        $region57: #{_fgwf_forward_batch_impl.1} parent=55 // pred_check
          %p407 = pneg %p43
        $region58: #{_fgwf_forward_batch_impl.1} parent=55 // pred_check_branch
          %409 = sbr.rel (%p407) target = $region60
        $region59: #{_fgwf_forward_batch_impl.1} parent=55 // pred_region
          %411 = dma.done [#allocation4], 128
        $region60: #{_fgwf_forward_batch_impl.1} parent=55 // pred_fallthru
          _
        %412 = sfence
        %p413 = pneg %p43
        %p414 = pneg %p40
        %p415 = pneg %p64
        %p416 = pneg %p61
        %p417 = pneg %p85
        %p418 = pneg %p82
        %p419 = scmp.lt.s32.totalorder %s27, 7
        %s420 = scalar_select %p419, %s27, 7
        %s421 = smul.addr %s420, 8
        %s422 = smul.addr %s421, 8
        %s423 = scalar_lea.vmem %s3, %s422
        %p424 = pneg %p111
        %p425 = pneg %p108
        %p426 = scmp.lt.s32.totalorder %s27, 7
        %s427 = scalar_select %p426, %s27, 7
        %s428 = smul.addr %s427, 2
        %s429 = smul.addr %s428, 8
        %s430 = scalar_lea.vmem %s4, %s429
        %p431 = pneg %p137
        %p432 = pneg %p134
        %p433 = scmp.lt.s32.totalorder %s27, 7
        %s434 = scalar_select %p433, %s27, 7
        %s435 = scalar_lea.vmem %s5, %s434
        %p436 = pneg %p163
        %p437 = pneg %p160
        %p438 = scmp.lt.s32.totalorder %s27, 7
        %s439 = scalar_select %p438, %s27, 7
        %s440 = smul.addr %s439, 2
        %s441 = smul.addr %s440, 8
        %s442 = scalar_lea.vmem %s6, %s441
        %p443 = pneg %p189
        %p444 = pneg %p186
        %p445 = scmp.lt.s32.totalorder %s27, 7
        %s446 = scalar_select %p445, %s27, 7
        %s447 = smul.addr %s446, 2
        %s448 = smul.addr %s447, 8
        %s449 = scalar_lea.vmem %s7, %s448
        %p450 = pneg %p215
        %p451 = pneg %p212
        %p452 = scmp.lt.s32.totalorder %s27, 7
        %s453 = scalar_select %p452, %s27, 7
        %s454 = smul.addr %s453, 2
        %s455 = smul.addr %s454, 8
        %s456 = scalar_lea.vmem %s8, %s455
        %p457 = pneg %p241
        %p458 = pneg %p238
        %p459 = pneg %p267
        %p460 = pneg %p264
        %s461 = sand.u32 %s254, 1
        %s462 = scalar_lea.sflag [#allocation3], %s461
        %s463 = sand.u32 %s254, 1
        %s464 = smul.addr %s463, 16
        %s465 = scalar_lea.vmem [#allocation5], %s464
        %p466 = pneg %p293
        %p467 = pneg %p290
        %p468 = scmp.lt.s32.totalorder %s27, 7
        %s469 = scalar_select %p468, %s27, 7
        %s470 = smul.addr %s469, 2
        %s471 = smul.addr %s470, 8
        %s472 = scalar_lea.vmem %s10, %s471
        %p473 = pneg %p319
        %p474 = pneg %p316
        %p475 = scmp.lt.s32.totalorder %s27, 7
        %s476 = scalar_select %p475, %s27, 7
        %s477 = scalar_lea.vmem %s11, %s476
        %p478 = scmp.lt.s32.totalorder %s27, 7
        %s479 = scalar_select %p478, %s27, 7
        %s480 = smul.addr %s479, 8
        %s481 = smul.addr %s480, 8
        %s482 = scalar_lea.vmem %s3, %s481
        %p483 = scmp.lt.s32.totalorder %s27, 7
        %s484 = scalar_select %p483, %s27, 7
        %s485 = smul.addr %s484, 2
        %s486 = smul.addr %s485, 8
        %s487 = scalar_lea.vmem %s4, %s486
        %p488 = scmp.lt.s32.totalorder %s27, 7
        %s489 = scalar_select %p488, %s27, 7
        %s490 = scalar_lea.vmem %s5, %s489
        %p491 = scmp.lt.s32.totalorder %s27, 7
        %s492 = scalar_select %p491, %s27, 7
        %s493 = smul.addr %s492, 2
        %s494 = smul.addr %s493, 8
        %s495 = scalar_lea.vmem %s6, %s494
        %p496 = scmp.lt.s32.totalorder %s27, 7
        %s497 = scalar_select %p496, %s27, 7
        %s498 = smul.addr %s497, 2
        %s499 = smul.addr %s498, 8
        %s500 = scalar_lea.vmem %s7, %s499
        %p501 = scmp.lt.s32.totalorder %s27, 7
        %s502 = scalar_select %p501, %s27, 7
        %s503 = smul.addr %s502, 2
        %s504 = smul.addr %s503, 8
        %s505 = scalar_lea.vmem %s8, %s504
        %p506 = scmp.lt.s32.totalorder %s27, 7
        %s507 = scalar_select %p506, %s27, 7
        %s508 = smul.addr %s507, 2
        %s509 = smul.addr %s508, 8
        %s510 = scalar_lea.vmem %s10, %s509
        %p511 = scmp.lt.s32.totalorder %s27, 7
        %s512 = scalar_select %p511, %s27, 7
        %s513 = scalar_lea.vmem %s11, %s512
        %s515 = smul.u32 %s27, 128
        %s516 = sld [smem:[#allocation2 + %s515]]
        %v517 = vld [vmem:[%s1] sm:$0xff]
        %v518 = vld [vmem:[%s1 + $0x8] sm:$0xff]
        %v519 = vxor.u32 %v517, 2147483648
        %v520 = vxor.u32 %v518, 2147483648
        %v521 = vmul.f32 %v519, 1.442695
        %v522 = vpow.pop %v521
        %v523 = vmul.f32 %v520, 1.442695
        %v524 = vpow.pop %v523
        %v525 = vadd.f32 %v522, 1.0
        %v526 = vadd.f32 %v524, 1.0
        %v527 = vrcp.pop %v525
        %v528 = vmul.f32 %v525, %v527
        %v529 = vsub.f32 1.0, %v528
        %v530 = vmul.f32 %v527, %v529
        %v531 = vadd.f32 %v527, %v530
        %vm532 = vweird.f32 %v525
        %vm533 = vweird.f32 %v527
        %vm534 = vmor %vm532, %vm533
        %v535 = vsel %vm534, %v527, %v531
        %v536 = vand.u32 2147483647, %v525
        %vm537 = vcmp.eq.f32.partialorder %v536, 8.507059e+37
        %v538 = vand.u32 %v525, 2147483648
        %v539 = vor.u32 1.1754944e-38, %v538
        %v540 = vsel %vm537, %v539, %v535
        %v541 = vmul.f32 1.0, %v540
        %v542 = vrcp.pop %v526
        %v543 = vmul.f32 %v526, %v542
        %v544 = vsub.f32 1.0, %v543
        %v545 = vmul.f32 %v542, %v544
        %v546 = vadd.f32 %v542, %v545
        %vm547 = vweird.f32 %v526
        %vm548 = vweird.f32 %v542
        %vm549 = vmor %vm547, %vm548
        %v550 = vsel %vm549, %v542, %v546
        %v551 = vand.u32 2147483647, %v526
        %vm552 = vcmp.eq.f32.partialorder %v551, 8.507059e+37
        %v553 = vand.u32 %v526, 2147483648
        %v554 = vor.u32 1.1754944e-38, %v553
        %v555 = vsel %vm552, %v554, %v550
        %v556 = vmul.f32 1.0, %v555
        %v557 = vpack.c.bf16 %v556, %v541
        %v558 = vld [vmem:[%s482] sm:$0xff]
        %v559 = vld [vmem:[%s482 + $0x8] sm:$0xff]
        %v560 = vpack.c.bf16 %v559, %v558
        %v561 = vld [vmem:[%s2] sm:$0xff]
        %v562 = vld [vmem:[%s2 + $0x8] sm:$0xff]
        %v563 = vpack.c.bf16 %v562, %v561
        %vm564 = vcmask 130048
        %v566 = vsel %vm564, %v560, 0
        %568 = vmatpush.bf16.msra.mxu0 0
        %569 = vmatpush.bf16.msra.mxu0 0
        %570 = vmatpush.bf16.msra.mxu0 0
        %571 = vmatpush.bf16.msra.mxu0 0
        %572 = vmatpush.bf16.msra.mxu0 0
        %573 = vmatpush.bf16.msra.mxu0 0
        %574 = vmatpush.bf16.msra.mxu0 0
        %575 = vmatpush.bf16.msra.mxu0 %v557
        %576 = vmatmul.bf16.gmra.mxu0 %v566
        %v577 = vpop.f32.mrf.mxu0
        %v578 = vadd.f32 0.0, %v577
        %v579 = vpop.f32.mrf.mxu0
        %v580 = vadd.f32 0.0, %v579
        %581 = vdwg.mxu0
        %v582 = vpack.c.bf16 %v580, %v578
        %v584 = vsel %vm564, %v582, 0
        %586 = vmatpush.bf16.xpose.msra.mxu0 0
        %587 = vmatpush.bf16.xpose.msra.mxu0 0
        %588 = vmatpush.bf16.xpose.msra.mxu0 0
        %589 = vmatpush.bf16.xpose.msra.mxu0 0
        %590 = vmatpush.bf16.xpose.msra.mxu0 0
        %591 = vmatpush.bf16.xpose.msra.mxu0 0
        %592 = vmatpush.bf16.xpose.msra.mxu0 0
        %593 = vmatpush.bf16.xpose.msra.mxu0 %v566
        %594 = vmatmul.bf16.gmra.mxu0 %v584
        %v595 = vpop.f32.mrf.mxu0
        %v596 = vadd.f32 0.0, %v595
        %v597 = vpop.f32.mrf.mxu0
        %v598 = vadd.f32 0.0, %v597
        %599 = vdwg.mxu0
        %600 = vmatpush.bf16.msra.mxu0 0
        %601 = vmatpush.bf16.msra.mxu0 0
        %602 = vmatpush.bf16.msra.mxu0 0
        %603 = vmatpush.bf16.msra.mxu0 0
        %604 = vmatpush.bf16.msra.mxu0 0
        %605 = vmatpush.bf16.msra.mxu0 0
        %606 = vmatpush.bf16.msra.mxu0 0
        %607 = vmatpush.bf16.msra.mxu0 %v563
        %608 = vmatmul.bf16.gmra.mxu0 %v566
        %v609 = vpop.f32.mrf.mxu0
        %v610 = vadd.f32 0.0, %v609
        %v611 = vpop.f32.mrf.mxu0
        %v612 = vadd.f32 0.0, %v611
        %613 = vdwg.mxu0
        %v614 = vstv %s516
        %v615 = vmul.f32 %v614, %v596
        %v616 = vmul.f32 %v614, %v598
        %v617 = vadd.f32 %v615, 0.0
        %v618 = vadd.f32 %v616, 0.0
        %v619 = vmul.f32 %v614, %v610
        %v620 = vmul.f32 %v614, %v612
        %v621 = vadd.f32 %v619, 0.0
        %v622 = vadd.f32 %v620, 0.0
        %s623 = sadd.s32 %s515, 1
        %s624 = sld [smem:[#allocation2 + %s623]]
        %s625 = scalar_lea.vmem %s1, 16
        %v626 = vld [vmem:[%s625] sm:$0xff]
        %v627 = vld [vmem:[%s625 + $0x8] sm:$0xff]
        %v628 = vxor.u32 %v626, 2147483648
        %v629 = vxor.u32 %v627, 2147483648
        %v630 = vmul.f32 %v628, 1.442695
        %v631 = vpow.pop %v630
        %v632 = vmul.f32 %v629, 1.442695
        %v633 = vpow.pop %v632
        %v634 = vadd.f32 %v631, 1.0
        %v635 = vadd.f32 %v633, 1.0
        %v636 = vrcp.pop %v634
        %v637 = vmul.f32 %v634, %v636
        %v638 = vsub.f32 1.0, %v637
        %v639 = vmul.f32 %v636, %v638
        %v640 = vadd.f32 %v636, %v639
        %vm641 = vweird.f32 %v634
        %vm642 = vweird.f32 %v636
        %vm643 = vmor %vm641, %vm642
        %v644 = vsel %vm643, %v636, %v640
        %v645 = vand.u32 2147483647, %v634
        %vm646 = vcmp.eq.f32.partialorder %v645, 8.507059e+37
        %v647 = vand.u32 %v634, 2147483648
        %v648 = vor.u32 1.1754944e-38, %v647
        %v649 = vsel %vm646, %v648, %v644
        %v650 = vmul.f32 1.0, %v649
        %v651 = vrcp.pop %v635
        %v652 = vmul.f32 %v635, %v651
        %v653 = vsub.f32 1.0, %v652
        %v654 = vmul.f32 %v651, %v653
        %v655 = vadd.f32 %v651, %v654
        %vm656 = vweird.f32 %v635
        %vm657 = vweird.f32 %v651
        %vm658 = vmor %vm656, %vm657
        %v659 = vsel %vm658, %v651, %v655
        %v660 = vand.u32 2147483647, %v635
        %vm661 = vcmp.eq.f32.partialorder %v660, 8.507059e+37
        %v662 = vand.u32 %v635, 2147483648
        %v663 = vor.u32 1.1754944e-38, %v662
        %v664 = vsel %vm661, %v663, %v659
        %v665 = vmul.f32 1.0, %v664
        %v666 = vpack.c.bf16 %v665, %v650
        %s667 = scalar_lea.vmem %s482, 16
        %v668 = vld [vmem:[%s667] sm:$0xff]
        %v669 = vld [vmem:[%s667 + $0x8] sm:$0xff]
        %v670 = vpack.c.bf16 %v669, %v668
        %s671 = scalar_lea.vmem %s2, 16
        %v672 = vld [vmem:[%s671] sm:$0xff]
        %v673 = vld [vmem:[%s671 + $0x8] sm:$0xff]
        %v674 = vpack.c.bf16 %v673, %v672
        %v676 = vsel %vm564, %v670, 0
        %678 = vmatpush.bf16.msra.mxu0 0
        %679 = vmatpush.bf16.msra.mxu0 0
        %680 = vmatpush.bf16.msra.mxu0 0
        %681 = vmatpush.bf16.msra.mxu0 0
        %682 = vmatpush.bf16.msra.mxu0 0
        %683 = vmatpush.bf16.msra.mxu0 0
        %684 = vmatpush.bf16.msra.mxu0 0
        %685 = vmatpush.bf16.msra.mxu0 %v666
        %686 = vmatmul.bf16.gmra.mxu0 %v676
        %v687 = vpop.f32.mrf.mxu0
        %v688 = vadd.f32 0.0, %v687
        %v689 = vpop.f32.mrf.mxu0
        %v690 = vadd.f32 0.0, %v689
        %691 = vdwg.mxu0
        %v692 = vpack.c.bf16 %v690, %v688
        %v694 = vsel %vm564, %v692, 0
        %696 = vmatpush.bf16.xpose.msra.mxu0 0
        %697 = vmatpush.bf16.xpose.msra.mxu0 0
        %698 = vmatpush.bf16.xpose.msra.mxu0 0
        %699 = vmatpush.bf16.xpose.msra.mxu0 0
        %700 = vmatpush.bf16.xpose.msra.mxu0 0
        %701 = vmatpush.bf16.xpose.msra.mxu0 0
        %702 = vmatpush.bf16.xpose.msra.mxu0 0
        %703 = vmatpush.bf16.xpose.msra.mxu0 %v676
        %704 = vmatmul.bf16.gmra.mxu0 %v694
        %v705 = vpop.f32.mrf.mxu0
        %v706 = vadd.f32 0.0, %v705
        %v707 = vpop.f32.mrf.mxu0
        %v708 = vadd.f32 0.0, %v707
        %709 = vdwg.mxu0
        %710 = vmatpush.bf16.msra.mxu0 0
        %711 = vmatpush.bf16.msra.mxu0 0
        %712 = vmatpush.bf16.msra.mxu0 0
        %713 = vmatpush.bf16.msra.mxu0 0
        %714 = vmatpush.bf16.msra.mxu0 0
        %715 = vmatpush.bf16.msra.mxu0 0
        %716 = vmatpush.bf16.msra.mxu0 0
        %717 = vmatpush.bf16.msra.mxu0 %v674
        %718 = vmatmul.bf16.gmra.mxu0 %v676
        %v719 = vpop.f32.mrf.mxu0
        %v720 = vadd.f32 0.0, %v719
        %v721 = vpop.f32.mrf.mxu0
        %v722 = vadd.f32 0.0, %v721
        %723 = vdwg.mxu0
        %v724 = vstv %s624
        %v725 = vmul.f32 %v724, %v706
        %v726 = vmul.f32 %v724, %v708
        %v727 = vadd.f32 %v617, %v725
        %v728 = vadd.f32 %v618, %v726
        %v729 = vmul.f32 %v724, %v720
        %v730 = vmul.f32 %v724, %v722
        %v731 = vadd.f32 %v621, %v729
        %v732 = vadd.f32 %v622, %v730
        %s733 = sadd.s32 %s515, 2
        %s734 = sld [smem:[#allocation2 + %s733]]
        %s735 = scalar_lea.vmem %s1, 32
        %v736 = vld [vmem:[%s735] sm:$0xff]
        %v737 = vld [vmem:[%s735 + $0x8] sm:$0xff]
        %v738 = vxor.u32 %v736, 2147483648
        %v739 = vxor.u32 %v737, 2147483648
        %v740 = vmul.f32 %v738, 1.442695
        %v741 = vpow.pop %v740
        %v742 = vmul.f32 %v739, 1.442695
        %v743 = vpow.pop %v742
        %v744 = vadd.f32 %v741, 1.0
        %v745 = vadd.f32 %v743, 1.0
        %v746 = vrcp.pop %v744
        %v747 = vmul.f32 %v744, %v746
        %v748 = vsub.f32 1.0, %v747
        %v749 = vmul.f32 %v746, %v748
        %v750 = vadd.f32 %v746, %v749
        %vm751 = vweird.f32 %v744
        %vm752 = vweird.f32 %v746
        %vm753 = vmor %vm751, %vm752
        %v754 = vsel %vm753, %v746, %v750
        %v755 = vand.u32 2147483647, %v744
        %vm756 = vcmp.eq.f32.partialorder %v755, 8.507059e+37
        %v757 = vand.u32 %v744, 2147483648
        %v758 = vor.u32 1.1754944e-38, %v757
        %v759 = vsel %vm756, %v758, %v754
        %v760 = vmul.f32 1.0, %v759
        %v761 = vrcp.pop %v745
        %v762 = vmul.f32 %v745, %v761
        %v763 = vsub.f32 1.0, %v762
        %v764 = vmul.f32 %v761, %v763
        %v765 = vadd.f32 %v761, %v764
        %vm766 = vweird.f32 %v745
        %vm767 = vweird.f32 %v761
        %vm768 = vmor %vm766, %vm767
        %v769 = vsel %vm768, %v761, %v765
        %v770 = vand.u32 2147483647, %v745
        %vm771 = vcmp.eq.f32.partialorder %v770, 8.507059e+37
        %v772 = vand.u32 %v745, 2147483648
        %v773 = vor.u32 1.1754944e-38, %v772
        %v774 = vsel %vm771, %v773, %v769
        %v775 = vmul.f32 1.0, %v774
        %v776 = vpack.c.bf16 %v775, %v760
        %s777 = scalar_lea.vmem %s482, 32
        %v778 = vld [vmem:[%s777] sm:$0xff]
        %v779 = vld [vmem:[%s777 + $0x8] sm:$0xff]
        %v780 = vpack.c.bf16 %v779, %v778
        %s781 = scalar_lea.vmem %s2, 32
        %v782 = vld [vmem:[%s781] sm:$0xff]
        %v783 = vld [vmem:[%s781 + $0x8] sm:$0xff]
        %v784 = vpack.c.bf16 %v783, %v782
        %v786 = vsel %vm564, %v780, 0
        %788 = vmatpush.bf16.msra.mxu0 0
        %789 = vmatpush.bf16.msra.mxu0 0
        %790 = vmatpush.bf16.msra.mxu0 0
        %791 = vmatpush.bf16.msra.mxu0 0
        %792 = vmatpush.bf16.msra.mxu0 0
        %793 = vmatpush.bf16.msra.mxu0 0
        %794 = vmatpush.bf16.msra.mxu0 0
        %795 = vmatpush.bf16.msra.mxu0 %v776
        %796 = vmatmul.bf16.gmra.mxu0 %v786
        %v797 = vpop.f32.mrf.mxu0
        %v798 = vadd.f32 0.0, %v797
        %v799 = vpop.f32.mrf.mxu0
        %v800 = vadd.f32 0.0, %v799
        %801 = vdwg.mxu0
        %v802 = vpack.c.bf16 %v800, %v798
        %v804 = vsel %vm564, %v802, 0
        %806 = vmatpush.bf16.xpose.msra.mxu0 0
        %807 = vmatpush.bf16.xpose.msra.mxu0 0
        %808 = vmatpush.bf16.xpose.msra.mxu0 0
        %809 = vmatpush.bf16.xpose.msra.mxu0 0
        %810 = vmatpush.bf16.xpose.msra.mxu0 0
        %811 = vmatpush.bf16.xpose.msra.mxu0 0
        %812 = vmatpush.bf16.xpose.msra.mxu0 0
        %813 = vmatpush.bf16.xpose.msra.mxu0 %v786
        %814 = vmatmul.bf16.gmra.mxu0 %v804
        %v815 = vpop.f32.mrf.mxu0
        %v816 = vadd.f32 0.0, %v815
        %v817 = vpop.f32.mrf.mxu0
        %v818 = vadd.f32 0.0, %v817
        %819 = vdwg.mxu0
        %820 = vmatpush.bf16.msra.mxu0 0
        %821 = vmatpush.bf16.msra.mxu0 0
        %822 = vmatpush.bf16.msra.mxu0 0
        %823 = vmatpush.bf16.msra.mxu0 0
        %824 = vmatpush.bf16.msra.mxu0 0
        %825 = vmatpush.bf16.msra.mxu0 0
        %826 = vmatpush.bf16.msra.mxu0 0
        %827 = vmatpush.bf16.msra.mxu0 %v784
        %828 = vmatmul.bf16.gmra.mxu0 %v786
        %v829 = vpop.f32.mrf.mxu0
        %v830 = vadd.f32 0.0, %v829
        %v831 = vpop.f32.mrf.mxu0
        %v832 = vadd.f32 0.0, %v831
        %833 = vdwg.mxu0
        %v834 = vstv %s734
        %v835 = vmul.f32 %v834, %v816
        %v836 = vmul.f32 %v834, %v818
        %v837 = vadd.f32 %v727, %v835
        %v838 = vadd.f32 %v728, %v836
        %v839 = vmul.f32 %v834, %v830
        %v840 = vmul.f32 %v834, %v832
        %v841 = vadd.f32 %v731, %v839
        %v842 = vadd.f32 %v732, %v840
        %s843 = sadd.s32 %s515, 3
        %s844 = sld [smem:[#allocation2 + %s843]]
        %s845 = scalar_lea.vmem %s1, 48
        %v846 = vld [vmem:[%s845] sm:$0xff]
        %v847 = vld [vmem:[%s845 + $0x8] sm:$0xff]
        %v848 = vxor.u32 %v846, 2147483648
        %v849 = vxor.u32 %v847, 2147483648
        %v850 = vmul.f32 %v848, 1.442695
        %v851 = vpow.pop %v850
        %v852 = vmul.f32 %v849, 1.442695
        %v853 = vpow.pop %v852
        %v854 = vadd.f32 %v851, 1.0
        %v855 = vadd.f32 %v853, 1.0
        %v856 = vrcp.pop %v854
        %v857 = vmul.f32 %v854, %v856
        %v858 = vsub.f32 1.0, %v857
        %v859 = vmul.f32 %v856, %v858
        %v860 = vadd.f32 %v856, %v859
        %vm861 = vweird.f32 %v854
        %vm862 = vweird.f32 %v856
        %vm863 = vmor %vm861, %vm862
        %v864 = vsel %vm863, %v856, %v860
        %v865 = vand.u32 2147483647, %v854
        %vm866 = vcmp.eq.f32.partialorder %v865, 8.507059e+37
        %v867 = vand.u32 %v854, 2147483648
        %v868 = vor.u32 1.1754944e-38, %v867
        %v869 = vsel %vm866, %v868, %v864
        %v870 = vmul.f32 1.0, %v869
        %v871 = vrcp.pop %v855
        %v872 = vmul.f32 %v855, %v871
        %v873 = vsub.f32 1.0, %v872
        %v874 = vmul.f32 %v871, %v873
        %v875 = vadd.f32 %v871, %v874
        %vm876 = vweird.f32 %v855
        %vm877 = vweird.f32 %v871
        %vm878 = vmor %vm876, %vm877
        %v879 = vsel %vm878, %v871, %v875
        %v880 = vand.u32 2147483647, %v855
        %vm881 = vcmp.eq.f32.partialorder %v880, 8.507059e+37
        %v882 = vand.u32 %v855, 2147483648
        %v883 = vor.u32 1.1754944e-38, %v882
        %v884 = vsel %vm881, %v883, %v879
        %v885 = vmul.f32 1.0, %v884
        %v886 = vpack.c.bf16 %v885, %v870
        %s887 = scalar_lea.vmem %s482, 48
        %v888 = vld [vmem:[%s887] sm:$0xff]
        %v889 = vld [vmem:[%s887 + $0x8] sm:$0xff]
        %v890 = vpack.c.bf16 %v889, %v888
        %s891 = scalar_lea.vmem %s2, 48
        %v892 = vld [vmem:[%s891] sm:$0xff]
        %v893 = vld [vmem:[%s891 + $0x8] sm:$0xff]
        %v894 = vpack.c.bf16 %v893, %v892
        %v896 = vsel %vm564, %v890, 0
        %898 = vmatpush.bf16.msra.mxu0 0
        %899 = vmatpush.bf16.msra.mxu0 0
        %900 = vmatpush.bf16.msra.mxu0 0
        %901 = vmatpush.bf16.msra.mxu0 0
        %902 = vmatpush.bf16.msra.mxu0 0
        %903 = vmatpush.bf16.msra.mxu0 0
        %904 = vmatpush.bf16.msra.mxu0 0
        %905 = vmatpush.bf16.msra.mxu0 %v886
        %906 = vmatmul.bf16.gmra.mxu0 %v896
        %v907 = vpop.f32.mrf.mxu0
        %v908 = vadd.f32 0.0, %v907
        %v909 = vpop.f32.mrf.mxu0
        %v910 = vadd.f32 0.0, %v909
        %911 = vdwg.mxu0
        %v912 = vpack.c.bf16 %v910, %v908
        %v914 = vsel %vm564, %v912, 0
        %916 = vmatpush.bf16.xpose.msra.mxu0 0
        %917 = vmatpush.bf16.xpose.msra.mxu0 0
        %918 = vmatpush.bf16.xpose.msra.mxu0 0
        %919 = vmatpush.bf16.xpose.msra.mxu0 0
        %920 = vmatpush.bf16.xpose.msra.mxu0 0
        %921 = vmatpush.bf16.xpose.msra.mxu0 0
        %922 = vmatpush.bf16.xpose.msra.mxu0 0
        %923 = vmatpush.bf16.xpose.msra.mxu0 %v896
        %924 = vmatmul.bf16.gmra.mxu0 %v914
        %v925 = vpop.f32.mrf.mxu0
        %v926 = vadd.f32 0.0, %v925
        %v927 = vpop.f32.mrf.mxu0
        %v928 = vadd.f32 0.0, %v927
        %929 = vdwg.mxu0
        %930 = vmatpush.bf16.msra.mxu0 0
        %931 = vmatpush.bf16.msra.mxu0 0
        %932 = vmatpush.bf16.msra.mxu0 0
        %933 = vmatpush.bf16.msra.mxu0 0
        %934 = vmatpush.bf16.msra.mxu0 0
        %935 = vmatpush.bf16.msra.mxu0 0
        %936 = vmatpush.bf16.msra.mxu0 0
        %937 = vmatpush.bf16.msra.mxu0 %v894
        %938 = vmatmul.bf16.gmra.mxu0 %v896
        %v939 = vpop.f32.mrf.mxu0
        %v940 = vadd.f32 0.0, %v939
        %v941 = vpop.f32.mrf.mxu0
        %v942 = vadd.f32 0.0, %v941
        %943 = vdwg.mxu0
        %v944 = vstv %s844
        %v945 = vmul.f32 %v944, %v926
        %v946 = vmul.f32 %v944, %v928
        %v947 = vadd.f32 %v837, %v945
        %v948 = vadd.f32 %v838, %v946
        %v949 = vmul.f32 %v944, %v940
        %v950 = vmul.f32 %v944, %v942
        %v951 = vadd.f32 %v841, %v949
        %v952 = vadd.f32 %v842, %v950
        %v953 = vld [vmem:[%s487] sm:$0xff]
        %v954 = vld [vmem:[%s487 + $0x8] sm:$0xff]
        %v955 = vrcp.pop %v953
        %v956 = vmul.f32 %v953, %v955
        %v957 = vsub.f32 1.0, %v956
        %v958 = vmul.f32 %v955, %v957
        %v959 = vadd.f32 %v955, %v958
        %vm960 = vweird.f32 %v953
        %vm961 = vweird.f32 %v955
        %vm962 = vmor %vm960, %vm961
        %v963 = vsel %vm962, %v955, %v959
        %v964 = vand.u32 2147483647, %v953
        %vm965 = vcmp.eq.f32.partialorder %v964, 8.507059e+37
        %v966 = vand.u32 %v953, 2147483648
        %v967 = vor.u32 1.1754944e-38, %v966
        %v968 = vsel %vm965, %v967, %v963
        %v969 = vrcp.pop %v954
        %v970 = vmul.f32 %v954, %v969
        %v971 = vsub.f32 1.0, %v970
        %v972 = vmul.f32 %v969, %v971
        %v973 = vadd.f32 %v969, %v972
        %vm974 = vweird.f32 %v954
        %vm975 = vweird.f32 %v969
        %vm976 = vmor %vm974, %vm975
        %v977 = vsel %vm976, %v969, %v973
        %v978 = vand.u32 2147483647, %v954
        %vm979 = vcmp.eq.f32.partialorder %v978, 8.507059e+37
        %v980 = vand.u32 %v954, 2147483648
        %v981 = vor.u32 1.1754944e-38, %v980
        %v982 = vsel %vm979, %v981, %v977
        %v983 = vld [vmem:[%s490] sm:$0x1]
        %v984 = vrcp.pop %v983
        %v985 = vmul.f32 %v983, %v984
        %v986 = vsub.f32 1.0, %v985
        %v987 = vmul.f32 %v984, %v986
        %v988 = vadd.f32 %v984, %v987
        %vm989 = vweird.f32 %v983
        %vm990 = vweird.f32 %v984
        %vm991 = vmor %vm989, %vm990
        %v992 = vsel %vm991, %v984, %v988
        %v993 = vand.u32 2147483647, %v983
        %vm994 = vcmp.eq.f32.partialorder %v993, 8.507059e+37
        %v995 = vand.u32 %v983, 2147483648
        %v996 = vor.u32 1.1754944e-38, %v995
        %v997 = vsel %vm994, %v996, %v992
        %999 = vset.pattern.permute.xlu0 0
        %1000 = vperm.xlu0 %999, %v968
        %v1001 = vpop.permute.xlu0 %1000
        %1004 = vset.pattern.permute.xlu0 0
        %1005 = vperm.xlu0 %1004, %v982
        %v1006 = vpop.permute.xlu0 %1005
        %v1008 = vmul.f32 %v947, %v1001
        %v1009 = vmul.f32 %v948, %v1006
        %v1011 = vperm.slane %v997, 0
        %v1013 = vmul.f32 %v1008, %v1011
        %v1014 = vmul.f32 %v1009, %v1011
        %v1015 = vmul.f32 %v951, %v1001
        %v1016 = vmul.f32 %v952, %v1006
        %1017 = vst.msk [vmem:[%s465] sm:$0xff] %vm564, %v1013
        %1018 = vst.msk [vmem:[%s465 + $0x8] sm:$0xff] %vm564, %v1014
        %vm1019 = vcmask 31744
        %1020 = vst.msk [vmem:[%s510] sm:$0xff] %vm1019, %v1015
        %1021 = vst.msk [vmem:[%s510 + $0x8] sm:$0xff] %vm1019, %v1016
        %v1022 = vld [vmem:[%s495] sm:$0xff]
        %v1023 = vld [vmem:[%s495 + $0x8] sm:$0xff]
        %v1024 = vld [vmem:[%s505] sm:$0xff]
        %v1025 = vld [vmem:[%s505 + $0x8] sm:$0xff]
        %v1026 = vld [vmem:[%s500] sm:$0xff]
        %v1027 = vld [vmem:[%s500 + $0x8] sm:$0xff]
        %v1028 = vld [vmem:[%s487] sm:$0xff]
        %v1029 = vld [vmem:[%s487 + $0x8] sm:$0xff]
        %v1030 = vld [vmem:[%s490] sm:$0x1]
        %v1031 = vmul.f32 %v1022, %v1022
        %v1032 = vmul.f32 %v1023, %v1023
        %v1034 = vsel %vm564, %v1031, 0
        %v1037 = vsel %vm564, %v1032, 0
        %1039 = vmatpush.msra.mxu0 0.0
        %1040 = vmatpush.msra.mxu0 0.0
        %1041 = vmatpush.msra.mxu0 0.0
        %1042 = vmatpush.msra.mxu0 0.0
        %1043 = vmatpush.msra.mxu0 0.0
        %1044 = vmatpush.msra.mxu0 0.0
        %1045 = vmatpush.msra.mxu0 0.0
        %1046 = vmatpush.msra.mxu0 0.0
        %1047 = vmatpush.msra.mxu0 0.0
        %1048 = vmatpush.msra.mxu0 0.0
        %1049 = vmatpush.msra.mxu0 0.0
        %1050 = vmatpush.msra.mxu0 0.0
        %1051 = vmatpush.msra.mxu0 0.0
        %1052 = vmatpush.msra.mxu0 0.0
        %1053 = vmatpush.msra.mxu0 %v1029
        %1054 = vmatpush.msra.mxu0 %v1028
        %1055 = vmatmul.f32.gmra.mxu0 %v1034
        %v1056 = vpop.f32.mrf.mxu0
        %v1057 = vadd.f32 0.0, %v1056
        %1058 = vmatmul.f32.gmra.mxu0 %v1037
        %v1059 = vpop.f32.mrf.mxu0
        %v1060 = vadd.f32 0.0, %v1059
        %1061 = vdwg.mxu0
        %v1062 = vmul.f32 %v1013, %v1013
        %v1063 = vmul.f32 %v1014, %v1014
        %v1065 = vsel %vm564, %v1030, 0
        %v1068 = vsel %vm564, %v1062, 0
        %v1071 = vsel %vm564, %v1063, 0
        %1073 = vmatpush.xpose.msra.mxu0 0.0
        %1074 = vmatpush.xpose.msra.mxu0 0.0
        %1075 = vmatpush.xpose.msra.mxu0 0.0
        %1076 = vmatpush.xpose.msra.mxu0 0.0
        %1077 = vmatpush.xpose.msra.mxu0 0.0
        %1078 = vmatpush.xpose.msra.mxu0 0.0
        %1079 = vmatpush.xpose.msra.mxu0 0.0
        %1080 = vmatpush.xpose.msra.mxu0 0.0
        %1081 = vmatpush.xpose.msra.mxu0 0.0
        %1082 = vmatpush.xpose.msra.mxu0 0.0
        %1083 = vmatpush.xpose.msra.mxu0 0.0
        %1084 = vmatpush.xpose.msra.mxu0 0.0
        %1085 = vmatpush.xpose.msra.mxu0 0.0
        %1086 = vmatpush.xpose.msra.mxu0 0.0
        %1087 = vmatpush.xpose.msra.mxu0 %v1071
        %1088 = vmatpush.xpose.msra.mxu0 %v1068
        %1089 = vmatmul.f32.gmra.mxu0 %v1065
        %v1090 = vpop.f32.mrf.mxu0
        %v1091 = vadd.f32 0.0, %v1090
        %1092 = vdwg.mxu0
        %v1093 = vpack.c.bf16 %v1023, %v1022
        %v1094 = vpack.c.bf16 %v1025, %v1024
        %v1096 = vsel %vm564, %v1093, 0
        %1098 = vmatpush.bf16.msra.mxu0 0
        %1099 = vmatpush.bf16.msra.mxu0 0
        %1100 = vmatpush.bf16.msra.mxu0 0
        %1101 = vmatpush.bf16.msra.mxu0 0
        %1102 = vmatpush.bf16.msra.mxu0 0
        %1103 = vmatpush.bf16.msra.mxu0 0
        %1104 = vmatpush.bf16.msra.mxu0 0
        %1105 = vmatpush.bf16.msra.mxu0 %v1094
        %1106 = vmatmul.bf16.gmra.mxu0 %v1096
        %v1107 = vpop.f32.mrf.mxu0
        %v1108 = vadd.f32 0.0, %v1107
        %v1109 = vpop.f32.mrf.mxu0
        %v1110 = vadd.f32 0.0, %v1109
        %1111 = vdwg.mxu0
        %v1112 = vpack.c.bf16 %v1110, %v1108
        %v1113 = vpack.c.bf16 %v1014, %v1013
        %v1115 = vsel %vm564, %v1112, 0
        %v1118 = vsel %vm564, %v1113, 0
        %1120 = vmatpush.bf16.xpose.msra.mxu0 0
        %1121 = vmatpush.bf16.xpose.msra.mxu0 0
        %1122 = vmatpush.bf16.xpose.msra.mxu0 0
        %1123 = vmatpush.bf16.xpose.msra.mxu0 0
        %1124 = vmatpush.bf16.xpose.msra.mxu0 0
        %1125 = vmatpush.bf16.xpose.msra.mxu0 0
        %1126 = vmatpush.bf16.xpose.msra.mxu0 0
        %1127 = vmatpush.bf16.xpose.msra.mxu0 %v1118
        %1128 = vmatmul.bf16.gmra.mxu0 %v1115
        %v1129 = vpop.f32.mrf.mxu0
        %v1130 = vadd.f32 0.0, %v1129
        %v1131 = vpop.f32.mrf.mxu0
        %v1132 = vadd.f32 0.0, %v1131
        %1133 = vdwg.mxu0
        %1135 = vset.pattern.permute.xlu0 0
        %1136 = vperm.xlu0 %1135, %v1057
        %v1137 = vpop.permute.xlu0 %1136
        %1140 = vset.pattern.permute.xlu0 0
        %1141 = vperm.xlu0 %1140, %v1060
        %v1142 = vpop.permute.xlu0 %1141
        %v1144 = vperm.slane %v1091, 0
        %v1145 = vadd.f32 %v1137, %v1144
        %v1146 = vadd.f32 %v1142, %v1144
        %v1147 = vmul.f32 %v1130, 2.0
        %v1148 = vmul.f32 %v1132, 2.0
        %v1149 = vsub.f32 %v1145, %v1147
        %v1150 = vsub.f32 %v1146, %v1148
        %v1151 = vmul.f32 %v1026, %v1026
        %v1152 = vmul.f32 %v1027, %v1027
        %v1153 = vsel %vm1019, %v1151, 0.0
        %1154 = vadd.xlane.f32.xlu0 %v1153
        %v1155 = vpop.xlane.xlu0 %1154
        %v1156 = vsel %vm1019, %v1152, 0.0
        %1157 = vadd.xlane.f32.xlu0 %v1156
        %v1158 = vpop.xlane.xlu0 %1157
        %v1159 = vadd.f32 %v1155, 1e-12
        %v1160 = vadd.f32 %v1158, 1e-12
        %v1161 = vrsqrt.pop %v1159
        %v1162 = vmul.f32 %v1161, %v1159
        %v1163 = vmul.f32 %v1162, %v1161
        %v1164 = vmul.f32 0.5, %v1163
        %v1165 = vsub.f32 1.5, %v1164
        %v1166 = vmul.f32 %v1161, %v1165
        %vm1167 = vweird.f32 %v1159
        %vm1168 = vweird.f32 %v1161
        %vm1169 = vmor %vm1167, %vm1168
        %v1170 = vsel %vm1169, %v1161, %v1166
        %v1171 = vrsqrt.pop %v1160
        %v1172 = vmul.f32 %v1171, %v1160
        %v1173 = vmul.f32 %v1172, %v1171
        %v1174 = vmul.f32 0.5, %v1173
        %v1175 = vsub.f32 1.5, %v1174
        %v1176 = vmul.f32 %v1171, %v1175
        %vm1177 = vweird.f32 %v1160
        %vm1178 = vweird.f32 %v1171
        %vm1179 = vmor %vm1177, %vm1178
        %v1180 = vsel %vm1179, %v1171, %v1176
        %v1181 = vmul.f32 %v1015, %v1015
        %v1182 = vmul.f32 %v1016, %v1016
        %v1183 = vsel %vm1019, %v1181, 0.0
        %1184 = vadd.xlane.f32.xlu0 %v1183
        %v1185 = vpop.xlane.xlu0 %1184
        %v1186 = vsel %vm1019, %v1182, 0.0
        %1187 = vadd.xlane.f32.xlu0 %v1186
        %v1188 = vpop.xlane.xlu0 %1187
        %v1189 = vadd.f32 %v1185, 1e-12
        %v1190 = vadd.f32 %v1188, 1e-12
        %v1191 = vrsqrt.pop %v1189
        %v1192 = vmul.f32 %v1191, %v1189
        %v1193 = vmul.f32 %v1192, %v1191
        %v1194 = vmul.f32 0.5, %v1193
        %v1195 = vsub.f32 1.5, %v1194
        %v1196 = vmul.f32 %v1191, %v1195
        %vm1197 = vweird.f32 %v1189
        %vm1198 = vweird.f32 %v1191
        %vm1199 = vmor %vm1197, %vm1198
        %v1200 = vsel %vm1199, %v1191, %v1196
        %v1201 = vrsqrt.pop %v1190
        %v1202 = vmul.f32 %v1201, %v1190
        %v1203 = vmul.f32 %v1202, %v1201
        %v1204 = vmul.f32 0.5, %v1203
        %v1205 = vsub.f32 1.5, %v1204
        %v1206 = vmul.f32 %v1201, %v1205
        %vm1207 = vweird.f32 %v1190
        %vm1208 = vweird.f32 %v1201
        %vm1209 = vmor %vm1207, %vm1208
        %v1210 = vsel %vm1209, %v1201, %v1206
        %v1211 = vmul.f32 %v1026, %v1170
        %v1212 = vmul.f32 %v1027, %v1180
        %v1213 = vpack.c.bf16 %v1212, %v1211
        %v1214 = vmul.f32 %v1015, %v1200
        %v1215 = vmul.f32 %v1016, %v1210
        %v1216 = vpack.c.bf16 %v1215, %v1214
        %v1218 = vsel %vm1019, %v1213, 0
        %v1221 = vsel %vm1019, %v1216, 0
        %1223 = vmatpush.bf16.xpose.msra.mxu0 0
        %1224 = vmatpush.bf16.xpose.msra.mxu0 0
        %1225 = vmatpush.bf16.xpose.msra.mxu0 0
        %1226 = vmatpush.bf16.xpose.msra.mxu0 0
        %1227 = vmatpush.bf16.xpose.msra.mxu0 0
        %1228 = vmatpush.bf16.xpose.msra.mxu0 0
        %1229 = vmatpush.bf16.xpose.msra.mxu0 0
        %1230 = vmatpush.bf16.xpose.msra.mxu0 %v1221
        %1231 = vmatmul.bf16.gmra.mxu0 %v1218
        %v1232 = vpop.f32.mrf.mxu0
        %v1233 = vadd.f32 0.0, %v1232
        %v1234 = vpop.f32.mrf.mxu0
        %v1235 = vadd.f32 0.0, %v1234
        %1236 = vdwg.mxu0
        %v1237 = vsub.f32 1.0, %v1233
        %v1238 = vsub.f32 1.0, %v1235
        %v1239 = vmul.f32 %v1237, 0.5
        %v1240 = vmul.f32 %v1238, 0.5
        %v1241 = vadd.f32 %v1149, %v1239
        %v1242 = vadd.f32 %v1150, %v1240
        %v1243 = vmul.f32 %v1241, %v1024
        %v1244 = vmul.f32 %v1242, %v1025
        %v1245 = vsel %vm564, %v1243, 0.0
        %v1246 = vsel %vm564, %v1244, 0.0
        %v1247 = vadd.f32 %v1245, %v1246
        %1248 = vadd.xlane.f32.xlu0 %v1247
        %v1249 = vpop.xlane.xlu0 %1248
        %v1250 = vrot.slane %v1249, 4
        %v1251 = vadd.f32 %v1249, %v1250
        %v1252 = vrot.slane %v1251, 2
        %v1253 = vadd.f32 %v1251, %v1252
        %v1254 = vrot.slane %v1253, 1
        %v1255 = vadd.f32 %v1253, %v1254
        %s1256 = vtos %v1255
        %v1257 = vstv %s1256
        %vm1258 = vcmask 0
        %1259 = vst.msk [vmem:[%s513] sm:$0x1] %vm1258, %v1257
        %s1260 = sand.u32 %s254, 1
        %s1261 = scalar_lea.sflag [#allocation3], %s1260
        %s1262 = sand.u32 %s254, 1
        %s1263 = smul.addr %s1262, 16
        %s1264 = scalar_lea.vmem [#allocation5], %s1263
        %p1265 = scmp.lt.s32.totalorder %s27, 7
        %s1266 = scalar_select %p1265, %s27, 7
        %s1267 = smul.addr %s1266, 2
        %s1268 = smul.addr %s1267, 8
        %s1269 = scalar_lea.vmem %s10, %s1268
        %p1270 = scmp.lt.s32.totalorder %s27, 7
        %s1271 = scalar_select %p1270, %s27, 7
        %s1272 = scalar_lea.vmem %s11, %s1271
        // Predicated region
        $region61: #{_fgwf_forward_batch_impl.1} parent=55 // pred_check
          %p1273 = pneg %p264
        $region62: #{_fgwf_forward_batch_impl.1} parent=55 // pred_check_branch
          %1275 = sbr.rel (%p1273) target = $region64
        $region63: #{_fgwf_forward_batch_impl.1} parent=55 // pred_region
          %1277 = vsyncadd %s1261, 0
          %s1278 = smul.addr %s27, 2
          %s1279 = smul.addr %s1278, 8
          %s1280 = scalar_lea.hbm %s9, %s1279
          %s1281 = sshll.u32 %s1264, 4
          %s1282 = int_to_ptr.vmem [resolvable:$true] %s1281
          %s1283 = sshll.u32 %s1280, 4
          %s1284 = int_to_ptr.hbm [resolvable:$true] %s1283
          %1289 = dma.vmem_to_hbm [thread:$0]  %s1282, 256, %s1284, %s1261, 128, 128, 8
        $region64: #{_fgwf_forward_batch_impl.1} parent=55 // pred_fallthru
          _
        // Predicated region
        $region65: #{_fgwf_forward_batch_impl.1} parent=55 // pred_check
          %p1290 = pneg %p290
        $region66: #{_fgwf_forward_batch_impl.1} parent=55 // pred_check_branch
          %1292 = sbr.rel (%p1290) target = $region68
        $region67: #{_fgwf_forward_batch_impl.1} parent=55 // pred_region
          _
        $region68: #{_fgwf_forward_batch_impl.1} parent=55 // pred_fallthru
          _
        // Predicated region
        $region69: #{_fgwf_forward_batch_impl.1} parent=55 // pred_check
          %p1293 = pneg %p316
        $region70: #{_fgwf_forward_batch_impl.1} parent=55 // pred_check_branch
          %1295 = sbr.rel (%p1293) target = $region72
        $region71: #{_fgwf_forward_batch_impl.1} parent=55 // pred_region
          _
        $region72: #{_fgwf_forward_batch_impl.1} parent=55 // pred_fallthru
          _
      $region56: #{_fgwf_forward_batch_impl.1} parent=5 // pred_fallthru
        _
      %p1296 = scmp.le.s32.totalorder 2, %s22
      // Predicated region
      $region73: #{_fgwf_forward_batch_impl.1} parent=5 // pred_check
        %p1297 = pneg %p1296
      $region74: #{_fgwf_forward_batch_impl.1} parent=5 // pred_check_branch
        %1299 = sbr.rel (%p1297) target = $region76
      $region75: #{_fgwf_forward_batch_impl.1} parent=5 // pred_region
        %s1300 = ssub.s32 %s22, 2
        // Predicated region
        $region77: #{_fgwf_forward_batch_impl.1} parent=75 // pred_check
          %p1301 = pneg %p270
        $region78: #{_fgwf_forward_batch_impl.1} parent=75 // pred_check_branch
          %1303 = sbr.rel (%p1301) target = $region80
        $region79: #{_fgwf_forward_batch_impl.1} parent=75 // pred_region
          %s1304 = sand.u32 %s255, 1
          %s1305 = scalar_lea.sflag [#allocation3], %s1304
          %s1306 = sand.u32 %s255, 1
          %s1307 = smul.addr %s1306, 16
          %s1308 = scalar_lea.vmem [#allocation5], %s1307
          %1310 = dma.done %s1305, 256
        $region80: #{_fgwf_forward_batch_impl.1} parent=75 // pred_fallthru
          _
        // Predicated region
        $region81: #{_fgwf_forward_batch_impl.1} parent=75 // pred_check
          %p1311 = pneg %p296
        $region82: #{_fgwf_forward_batch_impl.1} parent=75 // pred_check_branch
          %1313 = sbr.rel (%p1311) target = $region84
        $region83: #{_fgwf_forward_batch_impl.1} parent=75 // pred_region
          %p1314 = scmp.lt.s32.totalorder %s28, 7
          %s1315 = scalar_select %p1314, %s28, 7
          %s1316 = smul.addr %s1315, 2
          %s1317 = smul.addr %s1316, 8
          %s1318 = scalar_lea.vmem %s10, %s1317
        $region84: #{_fgwf_forward_batch_impl.1} parent=75 // pred_fallthru
          _
        // Predicated region
        $region85: #{_fgwf_forward_batch_impl.1} parent=75 // pred_check
          %p1319 = pneg %p322
        $region86: #{_fgwf_forward_batch_impl.1} parent=75 // pred_check_branch
          %1321 = sbr.rel (%p1319) target = $region88
        $region87: #{_fgwf_forward_batch_impl.1} parent=75 // pred_region
          %p1322 = scmp.lt.s32.totalorder %s28, 7
          %s1323 = scalar_select %p1322, %s28, 7
          %s1324 = scalar_lea.vmem %s11, %s1323
        $region88: #{_fgwf_forward_batch_impl.1} parent=75 // pred_fallthru
          _
      $region76: #{_fgwf_forward_batch_impl.1} parent=5 // pred_fallthru
        _
    $region6: #{_fgwf_forward_batch_impl.1} parent=1 // loop_footer
      %s26 = sadd.s32 1, %s22
    $region7: #{_fgwf_forward_batch_impl.1} parent=1 // loop_footer_branch
      %21 = sbr.rel target = $region3
    $region8: #{_fgwf_forward_batch_impl.1} parent=1 // loop_exit
      _
    %1325 = vsyncpa [#allocation3], 1
    %s1326 = scalar_lea.sflag [#allocation3], 1
    %1327 = vsyncpa %s1326, 1
    %1328 = vsyncpa [#allocation4], 1
    %s1329 = scalar_lea.sflag [#allocation4], 1
    %1330 = vsyncpa %s1329, 1

</llo_original>
